<compile_context>
chip_gen: v5e
topology: v5e:2x2
jax: 0.10.0
libtpu: 0.0.40
codegen_flags: <defaults>
</compile_context>

<pallas_src>
import jax
import jax.numpy as jnp
from jax import lax
from jax.experimental import pallas as pl
from jax.experimental.pallas import tpu as pltpu

LANE = 128        # lane width: pad all feature dims to multiples of this
ROW_ALIGN = 16    # bf16 LHS sublane packing: pad the row (batch) dim to this
MAX_TILE_B = 256  # batch tile for the grid (one full MXU M tile on v6e/v7x)


def _round_up(x, m):
    return ((x + m - 1) // m) * m


def _batch_tiling(n):
    """Return (padded_rows, tile_rows, num_blocks) for the batch grid."""
    if n <= MAX_TILE_B:
        bp = _round_up(max(n, ROW_ALIGN), ROW_ALIGN)
        return bp, bp, 1
    bp = _round_up(n, MAX_TILE_B)
    return bp, MAX_TILE_B, bp // MAX_TILE_B


def _nbytes(shape, dtype):
    n = 1
    for d in shape:
        n *= int(d)
    return n * jnp.dtype(dtype).itemsize


def _leaky_relu(x, slope=0.1):
    return jnp.where(x >= 0, x, slope * x)


# ---------------------------------------------------------------------------
# Kernel bodies
# ---------------------------------------------------------------------------
def _mlp_block(feat, w0_ref, b0_ref, wh_ref, bh_ref, wl_ref, bl_ref, num_layers):
    """FFDiscriminator block: Linear->LeakyReLU (x num_layers+1) -> Linear(.,1).

    Matmul operands are bf16; accumulation and elementwise math are f32.
    """
    h = jnp.dot(feat.astype(jnp.bfloat16), w0_ref[...],
                preferred_element_type=jnp.float32) + b0_ref[...]
    h = _leaky_relu(h)

    def layer(i, h):
        h = jnp.dot(h.astype(jnp.bfloat16), wh_ref[i],
                    preferred_element_type=jnp.float32) + bh_ref[i]
        return _leaky_relu(h)

    # Unrolled fori_loop: per-layer (H,H) weight-tile live ranges stay bounded
    # to one iteration (guards vreg pressure / spills with only 64 vregs).
    h = lax.fori_loop(0, num_layers, layer, h, unroll=True)
    return jnp.dot(h.astype(jnp.bfloat16), wl_ref[...],
                   preferred_element_type=jnp.float32) + bl_ref[...]


def _make_fused_encode_kernel(num_layers):
    """encode=True path: autoencoder.encode fused with the discriminator block.

    Conditions arrive pre-positioned in the spare zero lanes
    [enc_out : enc_out + n_cond] of the padded encoder output, so torch.concat
    and the old split first Linear collapse into one add + one matmul.
    """
    def kernel(zf_ref, cond_ref, we_ref, be_ref,
               w0_ref, b0_ref, wh_ref, bh_ref, wl_ref, bl_ref, o_ref):
        enc = jnp.dot(zf_ref[...], we_ref[...],
                      preferred_element_type=jnp.float32) + be_ref[...]
        # Padded We/be columns are exactly zero -> tanh gives exactly 0 in the
        # condition lanes, so this add IS concat(encoded, conditions).
        feat = jnp.tanh(enc) + cond_ref[...]
        o_ref[...] = _mlp_block(feat, w0_ref, b0_ref, wh_ref, bh_ref,
                                wl_ref, bl_ref, num_layers)
    return kernel


def _make_block_kernel(num_layers):
    """encode=False path: discriminator block applied directly to features."""
    def kernel(x_ref, w0_ref, b0_ref, wh_ref, bh_ref, wl_ref, bl_ref, o_ref):
        o_ref[...] = _mlp_block(x_ref[...], w0_ref, b0_ref, wh_ref, bh_ref,
                                wl_ref, bl_ref, num_layers)
    return kernel


def _resident_spec(arr):
    # Full-array block with a constant block index: DMA'd once, stays resident
    # in VMEM across all batch-grid steps.
    zeros = (0,) * arr.ndim
    return pl.BlockSpec(arr.shape, lambda i, _z=zeros: _z)


# ---------------------------------------------------------------------------
# Wrapper
# ---------------------------------------------------------------------------
class AutoencoderDiscriminatorPallas:
    def __init__(self, *, input_dim, seq_len_data, n_cond, output_dim,
                 output_dim_2, hidden_dim=256, num_layers=4, dropout=0.1, key):
        self.input_dim = input_dim          # autoencoder.input_dim
        self.seq_len_data = seq_len_data    # time steps of the raw input z
        self.n_cond = n_cond                # condition channels appended to z
        self.output_dim = output_dim
        self.output_dim_2 = output_dim_2
        self.hidden_dim = hidden_dim
        self.num_layers = num_layers
        self.dropout = dropout              # identity at inference
        self.encode = True

        self.enc_in = seq_len_data * input_dim        # encoder flattened width
        self.enc_out = output_dim * output_dim_2      # encoded feature width
        # FFDiscriminator config from the torch constructor: seq_len=1 and
        # channels = (input_dim + n_cond) - input_dim + output_dim*output_dim_2
        self.feat_dim = self.enc_out + n_cond

        # lane-dense padded sizes
        self.kp = _round_up(self.enc_in, LANE)
        self.fp = _round_up(self.feat_dim, LANE)       # encoded + condition lanes
        # hidden_dim must be a multiple of 128; prefer a multiple of 256 so each
        # hidden layer maps to whole 256x256 MXU tiles on v6e/v7x.
        assert hidden_dim % LANE == 0, "hidden_dim must be a multiple of 128"
        self.op = LANE                                 # logical output width is 1

        ks = jax.random.split(key, 8)
        s = 0.1
        we = jax.random.normal(ks[0], (self.enc_in, self.enc_out), jnp.float32) * s
        be = jax.random.normal(ks[1], (self.enc_out,), jnp.float32) * s
        w0 = jax.random.normal(ks[2], (self.feat_dim, hidden_dim), jnp.float32) * s
        b0 = jax.random.normal(ks[3], (hidden_dim,), jnp.float32) * s
        wh = jax.random.normal(ks[4], (num_layers, hidden_dim, hidden_dim), jnp.float32) * s
        bh = jax.random.normal(ks[5], (num_layers, hidden_dim), jnp.float32) * s
        wl = jax.random.normal(ks[6], (hidden_dim, 1), jnp.float32) * s
        bl = jax.random.normal(ks[7], (1,), jnp.float32) * s

        # unpadded f32 copies for the pure-JAX reference
        self.params_f32 = dict(we=we, be=be, w0=w0, b0=b0, wh=wh, bh=bh, wl=wl, bl=bl)

        def pad2(a, r, c, dtype):
            out = jnp.zeros((r, c), dtype)
            return out.at[:a.shape[0], :a.shape[1]].set(a.astype(dtype))

        bf = jnp.bfloat16
        # Weights stored bf16 (halves DMA bytes, native MXU dtype); biases f32.
        # Zero padding keeps the logical math exact (padded rows/cols give 0),
        # and the zero tail lanes of We/be are what makes the merged-concat trick
        # in the kernel exact.
        self.we_p = pad2(we, self.kp, self.fp, bf)
        self.be_p = pad2(be[None, :], 1, self.fp, jnp.float32)
        self.w0_p = pad2(w0, self.fp, hidden_dim, bf)        # single first Linear
        self.b0_p = pad2(b0[None, :], 1, hidden_dim, jnp.float32)
        self.wh_p = wh.astype(bf)                            # (L, H, H)
        self.bh_p = bh.astype(jnp.float32)[:, None, :]       # (L, 1, H)
        self.wl_p = pad2(wl, hidden_dim, self.op, bf)
        self.bl_p = pad2(bl[None, :], 1, self.op, jnp.float32)

        # jit the whole forward (pad -> pallas_call -> slice) so host dispatch
        # of wrapper ops does not dominate wall time at small batch.
        self._fwd_encode = jax.jit(self._forward_encode_impl)
        self._fwd_block = jax.jit(self._forward_block_impl)

    # -- fused pallas_call ----------------------------------------------------
    def _run(self, data_args, with_encoder, tile_b, nb):
        H = self.hidden_dim
        if with_encoder:
            kernel = _make_fused_encode_kernel(self.num_layers)
            data_specs = [pl.BlockSpec((tile_b, self.kp), lambda i: (i, 0)),
                          pl.BlockSpec((tile_b, self.fp), lambda i: (i, 0))]
            enc_weights = (self.we_p, self.be_p)
        else:
            kernel = _make_block_kernel(self.num_layers)
            data_specs = [pl.BlockSpec((tile_b, self.fp), lambda i: (i, 0))]
            enc_weights = ()
        weights = enc_weights + (self.w0_p, self.b0_p, self.wh_p, self.bh_p,
                                 self.wl_p, self.bl_p)
        weight_specs = [_resident_spec(w) for w in weights]
        args = tuple(data_args) + weights
        in_specs = data_specs + weight_specs

        bp = tile_b * nb
        flops = 2 * bp * ((self.kp * self.fp if with_encoder else 0)
                          + self.fp * H
                          + self.num_layers * H * H
                          + H * self.op)
        bytes_accessed = sum(_nbytes(a.shape, a.dtype) for a in args) \
            + bp * self.op * 4
        cost = pl.CostEstimate(flops=int(flops),
                               transcendentals=int(bp * self.fp if with_encoder else 0),
                               bytes_accessed=int(bytes_accessed))

        # VMEM budget: resident weights + double-buffered activation/output
        # blocks, with headroom; capped at the v7x 64 MiB physical ceiling.
        blk = sum(_nbytes(w.shape, w.dtype) for w in weights)
        blk += sum(_nbytes((tile_b,) + a.shape[1:], a.dtype) for a in data_args)
        blk += _nbytes((tile_b, self.op), jnp.float32)
        vmem_limit = int(min(max(4 * blk + (8 << 20), 32 << 20), 64 << 20))

        return pl.pallas_call(
            kernel,
            out_shape=jax.ShapeDtypeStruct((bp, self.op), jnp.float32),
            grid=(nb,),
            in_specs=in_specs,
            out_specs=pl.BlockSpec((tile_b, self.op), lambda i: (i, 0)),
            compiler_params=pltpu.CompilerParams(
                dimension_semantics=("parallel",),
                vmem_limit_bytes=vmem_limit),
            cost_estimate=cost,
        )(*args)

    # -- jitted forwards -------------------------------------------------------
    def _forward_encode_impl(self, z):
        bf = jnp.bfloat16
        B = z.shape[0]
        bp, tile_b, nb = _batch_tiling(B)
        z_enc = z[:, :, :self.input_dim].reshape(B, self.enc_in)
        cond = z[:, 0, self.input_dim:]
        zf_p = jnp.zeros((bp, self.kp), bf).at[:B, :self.enc_in].set(z_enc.astype(bf))
        # conditions pre-positioned in the spare zero lanes of the encoder output
        cond_p = jnp.zeros((bp, self.fp), bf).at[
            :B, self.enc_out:self.feat_dim].set(cond.astype(bf))
        out_p = self._run((zf_p, cond_p), with_encoder=True, tile_b=tile_b, nb=nb)
        return out_p[:B, :1].reshape(B, 1, 1)

    def _forward_block_impl(self, z):
        bf = jnp.bfloat16
        lead = z.shape[:-1]
        x2 = z.reshape(-1, self.feat_dim)
        n = x2.shape[0]
        npad, tile_b, nb = _batch_tiling(n)
        x_p = jnp.zeros((npad, self.fp), bf).at[:n, :self.feat_dim].set(x2.astype(bf))
        out_p = self._run((x_p,), with_encoder=False, tile_b=tile_b, nb=nb)
        return out_p[:n, :1].reshape(*lead, 1)

    # -- public API ------------------------------------------------------------
    def __call__(self, z):
        if self.encode:
            return self._fwd_encode(z)
        return self._fwd_block(z)

    def encode_input(self, mode=True):
        self.encode = mode


# ---------------------------------------------------------------------------
# Pure-JAX reference (same bf16-operand / f32-accumulate recipe)
# ---------------------------------------------------------------------------
def _bf16_dot(a, b):
    return jnp.dot(a.astype(jnp.bfloat16), b.astype(jnp.bfloat16),
                   preferred_element_type=jnp.float32)


def _reference_block_2d(model, x2):
    p = model.params_f32
    h = _bf16_dot(x2, p["w0"]) + p["b0"]
    h = jnp.where(h >= 0, h, 0.1 * h)
    for i in range(model.num_layers):
        h = _bf16_dot(h, p["wh"][i]) + p["bh"][i]
        h = jnp.where(h >= 0, h, 0.1 * h)
    return _bf16_dot(h, p["wl"]) + p["bl"]


def _reference_forward(model, z):
    p = model.params_f32
    B = z.shape[0]
    z_enc = z[:, :, :model.input_dim].reshape(B, -1)
    enc = jnp.tanh(_bf16_dot(z_enc, p["we"]) + p["be"])
    cond = z[:, 0, model.input_dim:]
    x2 = jnp.concatenate([enc, cond], axis=-1)
    return _reference_block_2d(model, x2).reshape(B, 1, 1)


def _reference_block(model, z):
    lead = z.shape[:-1]
    return _reference_block_2d(model, z.reshape(-1, model.feat_dim)).reshape(*lead, 1)


# ---------------------------------------------------------------------------
if __name__ == "__main__":
    key = jax.random.PRNGKey(0)
    k_param, k_data = jax.random.split(key)

    B, SEQ, IN_DIM, N_COND = 2, 8, 4, 3
    OUT_DIM, OUT_DIM2 = 2, 8
    HIDDEN, NUM_LAYERS = 256, 4

    model = AutoencoderDiscriminatorPallas(
        input_dim=IN_DIM, seq_len_data=SEQ, n_cond=N_COND,
        output_dim=OUT_DIM, output_dim_2=OUT_DIM2,
        hidden_dim=HIDDEN, num_layers=NUM_LAYERS, key=k_param)

    # z: (batch, sequence_length, channels + conditions)
    z = jax.random.normal(k_data, (B, SEQ, IN_DIM + N_COND), jnp.float32)

    out = model(z)
    jax.block_until_ready(out)
    assert out.shape == (B, 1, 1), out.shape
    ref = _reference_forward(model, z)
    assert jnp.allclose(out, ref, atol=1e-3, rtol=1e-3), "encode=True mismatch"

    # encode=False path: block applied directly to pre-encoded features
    model.encode_input(False)
    z2 = jax.random.normal(jax.random.PRNGKey(1), (B, 1, model.feat_dim), jnp.float32)
    out2 = model(z2)
    jax.block_until_ready(out2)
    assert out2.shape == (B, 1, 1), out2.shape
    ref2 = _reference_block(model, z2)
    assert jnp.allclose(out2, ref2, atol=1e-3, rtol=1e-3), "encode=False mismatch"

    print("KERNEL_OK")
</pallas_src>

<mosaic_0001>
module attributes {stable_mosaic.version = 11 : i64} {
  func.func @kernel(%arg0: i32, %arg1: memref<16x128xbf16, #tpu.memory_space<vmem>>, %arg2: memref<16x128xbf16, #tpu.memory_space<vmem>>, %arg3: memref<128x128xbf16, #tpu.memory_space<vmem>>, %arg4: memref<1x128xf32, #tpu.memory_space<vmem>>, %arg5: memref<128x256xbf16, #tpu.memory_space<vmem>>, %arg6: memref<1x256xf32, #tpu.memory_space<vmem>>, %arg7: memref<4x256x256xbf16, #tpu.memory_space<vmem>>, %arg8: memref<4x1x256xf32, #tpu.memory_space<vmem>>, %arg9: memref<256x128xbf16, #tpu.memory_space<vmem>>, %arg10: memref<1x128xf32, #tpu.memory_space<vmem>>, %arg11: memref<16x128xf32, #tpu.memory_space<vmem>>) attributes {dimension_semantics = [#tpu.dimension_semantics<parallel>], iteration_bounds = array<i64: 1>, scalar_prefetch = 0 : i64, scratch_operands = 0 : i64, tpu.core_type = #tpu.core_type<tc>, window_params = [{transform_indices = @transform_0, window_bounds = array<i64: 16, 128>}, {transform_indices = @transform_1, window_bounds = array<i64: 16, 128>}, {pipeline_mode = #tpu.pipeline_mode<synchronous>, transform_indices = @transform_2, window_bounds = array<i64: 128, 128>}, {pipeline_mode = #tpu.pipeline_mode<synchronous>, transform_indices = @transform_3, window_bounds = array<i64: 1, 128>}, {pipeline_mode = #tpu.pipeline_mode<synchronous>, transform_indices = @transform_4, window_bounds = array<i64: 128, 256>}, {pipeline_mode = #tpu.pipeline_mode<synchronous>, transform_indices = @transform_5, window_bounds = array<i64: 1, 256>}, {pipeline_mode = #tpu.pipeline_mode<synchronous>, transform_indices = @transform_6, window_bounds = array<i64: 4, 256, 256>}, {pipeline_mode = #tpu.pipeline_mode<synchronous>, transform_indices = @transform_7, window_bounds = array<i64: 4, 1, 256>}, {pipeline_mode = #tpu.pipeline_mode<synchronous>, transform_indices = @transform_8, window_bounds = array<i64: 256, 128>}, {pipeline_mode = #tpu.pipeline_mode<synchronous>, transform_indices = @transform_9, window_bounds = array<i64: 1, 128>}, {transform_indices = @transform_10, window_bounds = array<i64: 16, 128>}]} {
    %c0 = arith.constant 0 : index
    %c0_0 = arith.constant 0 : index
    %0 = vector.load %arg1[%c0, %c0_0] : memref<16x128xbf16, #tpu.memory_space<vmem>>, vector<16x128xbf16>
    %c0_1 = arith.constant 0 : index
    %c0_2 = arith.constant 0 : index
    %1 = vector.load %arg3[%c0_1, %c0_2] : memref<128x128xbf16, #tpu.memory_space<vmem>>, vector<128x128xbf16>
    %cst = arith.constant dense<0.000000e+00> : vector<16x128xf32>
    %2 = tpu.matmul %0, %1, %cst {dimension_numbers = #tpu.dot_dimension_numbers<[1], [0], [0], [1], [0, 0, 1, 1], [], []>} : vector<16x128xbf16>, vector<128x128xbf16>, vector<16x128xf32> -> vector<16x128xf32>
    %c0_3 = arith.constant 0 : index
    %c0_4 = arith.constant 0 : index
    %3 = vector.load %arg4[%c0_3, %c0_4] : memref<1x128xf32, #tpu.memory_space<vmem>>, vector<1x128xf32>
    %4 = vector.broadcast %3 : vector<1x128xf32> to vector<16x128xf32>
    %5 = arith.addf %2, %4 : vector<16x128xf32>
    %6 = math.tanh %5 : vector<16x128xf32>
    %c0_5 = arith.constant 0 : index
    %c0_6 = arith.constant 0 : index
    %7 = vector.load %arg2[%c0_5, %c0_6] : memref<16x128xbf16, #tpu.memory_space<vmem>>, vector<16x128xbf16>
    %8 = arith.extf %7 : vector<16x128xbf16> to vector<16x128xf32>
    %9 = arith.addf %6, %8 : vector<16x128xf32>
    %10 = arith.truncf %9 : vector<16x128xf32> to vector<16x128xbf16>
    %c0_7 = arith.constant 0 : index
    %c0_8 = arith.constant 0 : index
    %11 = vector.load %arg5[%c0_7, %c0_8] : memref<128x256xbf16, #tpu.memory_space<vmem>>, vector<128x256xbf16>
    %cst_9 = arith.constant dense<0.000000e+00> : vector<16x256xf32>
    %12 = tpu.matmul %10, %11, %cst_9 {dimension_numbers = #tpu.dot_dimension_numbers<[1], [0], [0], [1], [0, 0, 1, 1], [], []>} : vector<16x128xbf16>, vector<128x256xbf16>, vector<16x256xf32> -> vector<16x256xf32>
    %c0_10 = arith.constant 0 : index
    %c0_11 = arith.constant 0 : index
    %13 = vector.load %arg6[%c0_10, %c0_11] : memref<1x256xf32, #tpu.memory_space<vmem>>, vector<1x256xf32>
    %14 = vector.broadcast %13 : vector<1x256xf32> to vector<16x256xf32>
    %15 = arith.addf %12, %14 : vector<16x256xf32>
    %cst_12 = arith.constant 0.000000e+00 : f32
    %16 = vector.broadcast %cst_12 : f32 to vector<16x256xf32>
    %17 = arith.cmpf oge, %15, %16 : vector<16x256xf32>
    %cst_13 = arith.constant 1.000000e-01 : f32
    %18 = vector.broadcast %cst_13 : f32 to vector<16x256xf32>
    %19 = arith.mulf %18, %15 : vector<16x256xf32>
    %20 = arith.select %17, %15, %19 : vector<16x256xi1>, vector<16x256xf32>
    %c0_i32 = arith.constant 0 : i32
    %21 = arith.truncf %20 : vector<16x256xf32> to vector<16x256xbf16>
    %22 = arith.index_cast %c0_i32 : i32 to index
    %c0_14 = arith.constant 0 : index
    %c0_15 = arith.constant 0 : index
    %23 = vector.load %arg7[%22, %c0_14, %c0_15] : memref<4x256x256xbf16, #tpu.memory_space<vmem>>, vector<1x256x256xbf16>
    %24 = vector.shape_cast %23 : vector<1x256x256xbf16> to vector<256x256xbf16>
    %cst_16 = arith.constant dense<0.000000e+00> : vector<16x256xf32>
    %25 = tpu.matmul %21, %24, %cst_16 {dimension_numbers = #tpu.dot_dimension_numbers<[1], [0], [0], [1], [0, 0, 1, 1], [], []>} : vector<16x256xbf16>, vector<256x256xbf16>, vector<16x256xf32> -> vector<16x256xf32>
    %26 = arith.index_cast %c0_i32 : i32 to index
    %c0_17 = arith.constant 0 : index
    %c0_18 = arith.constant 0 : index
    %27 = vector.load %arg8[%26, %c0_17, %c0_18] : memref<4x1x256xf32, #tpu.memory_space<vmem>>, vector<1x1x256xf32>
    %28 = vector.shape_cast %27 : vector<1x1x256xf32> to vector<1x256xf32>
    %29 = vector.broadcast %28 : vector<1x256xf32> to vector<16x256xf32>
    %30 = arith.addf %25, %29 : vector<16x256xf32>
    %cst_19 = arith.constant 0.000000e+00 : f32
    %31 = vector.broadcast %cst_19 : f32 to vector<16x256xf32>
    %32 = arith.cmpf oge, %30, %31 : vector<16x256xf32>
    %cst_20 = arith.constant 1.000000e-01 : f32
    %33 = vector.broadcast %cst_20 : f32 to vector<16x256xf32>
    %34 = arith.mulf %33, %30 : vector<16x256xf32>
    %35 = arith.select %32, %30, %34 : vector<16x256xi1>, vector<16x256xf32>
    %c1_i32 = arith.constant 1 : i32
    %36 = arith.truncf %35 : vector<16x256xf32> to vector<16x256xbf16>
    %37 = arith.index_cast %c1_i32 : i32 to index
    %c0_21 = arith.constant 0 : index
    %c0_22 = arith.constant 0 : index
    %38 = vector.load %arg7[%37, %c0_21, %c0_22] : memref<4x256x256xbf16, #tpu.memory_space<vmem>>, vector<1x256x256xbf16>
    %39 = vector.shape_cast %38 : vector<1x256x256xbf16> to vector<256x256xbf16>
    %cst_23 = arith.constant dense<0.000000e+00> : vector<16x256xf32>
    %40 = tpu.matmul %36, %39, %cst_23 {dimension_numbers = #tpu.dot_dimension_numbers<[1], [0], [0], [1], [0, 0, 1, 1], [], []>} : vector<16x256xbf16>, vector<256x256xbf16>, vector<16x256xf32> -> vector<16x256xf32>
    %41 = arith.index_cast %c1_i32 : i32 to index
    %c0_24 = arith.constant 0 : index
    %c0_25 = arith.constant 0 : index
    %42 = vector.load %arg8[%41, %c0_24, %c0_25] : memref<4x1x256xf32, #tpu.memory_space<vmem>>, vector<1x1x256xf32>
    %43 = vector.shape_cast %42 : vector<1x1x256xf32> to vector<1x256xf32>
    %44 = vector.broadcast %43 : vector<1x256xf32> to vector<16x256xf32>
    %45 = arith.addf %40, %44 : vector<16x256xf32>
    %cst_26 = arith.constant 0.000000e+00 : f32
    %46 = vector.broadcast %cst_26 : f32 to vector<16x256xf32>
    %47 = arith.cmpf oge, %45, %46 : vector<16x256xf32>
    %cst_27 = arith.constant 1.000000e-01 : f32
    %48 = vector.broadcast %cst_27 : f32 to vector<16x256xf32>
    %49 = arith.mulf %48, %45 : vector<16x256xf32>
    %50 = arith.select %47, %45, %49 : vector<16x256xi1>, vector<16x256xf32>
    %c2_i32 = arith.constant 2 : i32
    %51 = arith.truncf %50 : vector<16x256xf32> to vector<16x256xbf16>
    %52 = arith.index_cast %c2_i32 : i32 to index
    %c0_28 = arith.constant 0 : index
    %c0_29 = arith.constant 0 : index
    %53 = vector.load %arg7[%52, %c0_28, %c0_29] : memref<4x256x256xbf16, #tpu.memory_space<vmem>>, vector<1x256x256xbf16>
    %54 = vector.shape_cast %53 : vector<1x256x256xbf16> to vector<256x256xbf16>
    %cst_30 = arith.constant dense<0.000000e+00> : vector<16x256xf32>
    %55 = tpu.matmul %51, %54, %cst_30 {dimension_numbers = #tpu.dot_dimension_numbers<[1], [0], [0], [1], [0, 0, 1, 1], [], []>} : vector<16x256xbf16>, vector<256x256xbf16>, vector<16x256xf32> -> vector<16x256xf32>
    %56 = arith.index_cast %c2_i32 : i32 to index
    %c0_31 = arith.constant 0 : index
    %c0_32 = arith.constant 0 : index
    %57 = vector.load %arg8[%56, %c0_31, %c0_32] : memref<4x1x256xf32, #tpu.memory_space<vmem>>, vector<1x1x256xf32>
    %58 = vector.shape_cast %57 : vector<1x1x256xf32> to vector<1x256xf32>
    %59 = vector.broadcast %58 : vector<1x256xf32> to vector<16x256xf32>
    %60 = arith.addf %55, %59 : vector<16x256xf32>
    %cst_33 = arith.constant 0.000000e+00 : f32
    %61 = vector.broadcast %cst_33 : f32 to vector<16x256xf32>
    %62 = arith.cmpf oge, %60, %61 : vector<16x256xf32>
    %cst_34 = arith.constant 1.000000e-01 : f32
    %63 = vector.broadcast %cst_34 : f32 to vector<16x256xf32>
    %64 = arith.mulf %63, %60 : vector<16x256xf32>
    %65 = arith.select %62, %60, %64 : vector<16x256xi1>, vector<16x256xf32>
    %c3_i32 = arith.constant 3 : i32
    %66 = arith.truncf %65 : vector<16x256xf32> to vector<16x256xbf16>
    %67 = arith.index_cast %c3_i32 : i32 to index
    %c0_35 = arith.constant 0 : index
    %c0_36 = arith.constant 0 : index
    %68 = vector.load %arg7[%67, %c0_35, %c0_36] : memref<4x256x256xbf16, #tpu.memory_space<vmem>>, vector<1x256x256xbf16>
    %69 = vector.shape_cast %68 : vector<1x256x256xbf16> to vector<256x256xbf16>
    %cst_37 = arith.constant dense<0.000000e+00> : vector<16x256xf32>
    %70 = tpu.matmul %66, %69, %cst_37 {dimension_numbers = #tpu.dot_dimension_numbers<[1], [0], [0], [1], [0, 0, 1, 1], [], []>} : vector<16x256xbf16>, vector<256x256xbf16>, vector<16x256xf32> -> vector<16x256xf32>
    %71 = arith.index_cast %c3_i32 : i32 to index
    %c0_38 = arith.constant 0 : index
    %c0_39 = arith.constant 0 : index
    %72 = vector.load %arg8[%71, %c0_38, %c0_39] : memref<4x1x256xf32, #tpu.memory_space<vmem>>, vector<1x1x256xf32>
    %73 = vector.shape_cast %72 : vector<1x1x256xf32> to vector<1x256xf32>
    %74 = vector.broadcast %73 : vector<1x256xf32> to vector<16x256xf32>
    %75 = arith.addf %70, %74 : vector<16x256xf32>
    %cst_40 = arith.constant 0.000000e+00 : f32
    %76 = vector.broadcast %cst_40 : f32 to vector<16x256xf32>
    %77 = arith.cmpf oge, %75, %76 : vector<16x256xf32>
    %cst_41 = arith.constant 1.000000e-01 : f32
    %78 = vector.broadcast %cst_41 : f32 to vector<16x256xf32>
    %79 = arith.mulf %78, %75 : vector<16x256xf32>
    %80 = arith.select %77, %75, %79 : vector<16x256xi1>, vector<16x256xf32>
    %c4_i32 = arith.constant 4 : i32
    %81 = arith.truncf %80 : vector<16x256xf32> to vector<16x256xbf16>
    %c0_42 = arith.constant 0 : index
    %c0_43 = arith.constant 0 : index
    %82 = vector.load %arg9[%c0_42, %c0_43] : memref<256x128xbf16, #tpu.memory_space<vmem>>, vector<256x128xbf16>
    %cst_44 = arith.constant dense<0.000000e+00> : vector<16x128xf32>
    %83 = tpu.matmul %81, %82, %cst_44 {dimension_numbers = #tpu.dot_dimension_numbers<[1], [0], [0], [1], [0, 0, 1, 1], [], []>} : vector<16x256xbf16>, vector<256x128xbf16>, vector<16x128xf32> -> vector<16x128xf32>
    %c0_45 = arith.constant 0 : index
    %c0_46 = arith.constant 0 : index
    %84 = vector.load %arg10[%c0_45, %c0_46] : memref<1x128xf32, #tpu.memory_space<vmem>>, vector<1x128xf32>
    %85 = vector.broadcast %84 : vector<1x128xf32> to vector<16x128xf32>
    %86 = arith.addf %83, %85 : vector<16x128xf32>
    %c0_47 = arith.constant 0 : index
    %c0_48 = arith.constant 0 : index
    %87 = vector.load %arg11[%c0_47, %c0_48] : memref<16x128xf32, #tpu.memory_space<vmem>>, vector<16x128xf32>
    tpu.vector_store %arg11[%c0_47, %c0_48], %86 {strides = array<i32>} : memref<16x128xf32, #tpu.memory_space<vmem>>, vector<16x128xf32>,
    return
  }
  func.func @transform_0(%arg0: i32) -> (i32, i32) {
    %c0_i32 = arith.constant 0 : i32
    %c0_i32_0 = arith.constant 0 : i32
    return %arg0, %c0_i32 : i32, i32
  }
  func.func @transform_1(%arg0: i32) -> (i32, i32) {
    %c0_i32 = arith.constant 0 : i32
    %c0_i32_0 = arith.constant 0 : i32
    return %arg0, %c0_i32 : i32, i32
  }
  func.func @transform_2(%arg0: i32) -> (i32, i32) {
    %c0_i32 = arith.constant 0 : i32
    %c0_i32_0 = arith.constant 0 : i32
    %c0_i32_1 = arith.constant 0 : i32
    return %c0_i32, %c0_i32_0 : i32, i32
  }
  func.func @transform_3(%arg0: i32) -> (i32, i32) {
    %c0_i32 = arith.constant 0 : i32
    %c0_i32_0 = arith.constant 0 : i32
    %c0_i32_1 = arith.constant 0 : i32
    return %c0_i32, %c0_i32_0 : i32, i32
  }
  func.func @transform_4(%arg0: i32) -> (i32, i32) {
    %c0_i32 = arith.constant 0 : i32
    %c0_i32_0 = arith.constant 0 : i32
    %c0_i32_1 = arith.constant 0 : i32
    return %c0_i32, %c0_i32_0 : i32, i32
  }
  func.func @transform_5(%arg0: i32) -> (i32, i32) {
    %c0_i32 = arith.constant 0 : i32
    %c0_i32_0 = arith.constant 0 : i32
    %c0_i32_1 = arith.constant 0 : i32
    return %c0_i32, %c0_i32_0 : i32, i32
  }
  func.func @transform_6(%arg0: i32) -> (i32, i32, i32) {
    %c0_i32 = arith.constant 0 : i32
    %c0_i32_0 = arith.constant 0 : i32
    %c0_i32_1 = arith.constant 0 : i32
    %c0_i32_2 = arith.constant 0 : i32
    return %c0_i32, %c0_i32_0, %c0_i32_1 : i32, i32, i32
  }
  func.func @transform_7(%arg0: i32) -> (i32, i32, i32) {
    %c0_i32 = arith.constant 0 : i32
    %c0_i32_0 = arith.constant 0 : i32
    %c0_i32_1 = arith.constant 0 : i32
    %c0_i32_2 = arith.constant 0 : i32
    return %c0_i32, %c0_i32_0, %c0_i32_1 : i32, i32, i32
  }
  func.func @transform_8(%arg0: i32) -> (i32, i32) {
    %c0_i32 = arith.constant 0 : i32
    %c0_i32_0 = arith.constant 0 : i32
    %c0_i32_1 = arith.constant 0 : i32
    return %c0_i32, %c0_i32_0 : i32, i32
  }
  func.func @transform_9(%arg0: i32) -> (i32, i32) {
    %c0_i32 = arith.constant 0 : i32
    %c0_i32_0 = arith.constant 0 : i32
    %c0_i32_1 = arith.constant 0 : i32
    return %c0_i32, %c0_i32_0 : i32, i32
  }
  func.func @transform_10(%arg0: i32) -> (i32, i32) {
    %c0_i32 = arith.constant 0 : i32
    %c0_i32_0 = arith.constant 0 : i32
    return %arg0, %c0_i32 : i32, i32
  }
}

</mosaic_0001>

<llo_original>
// kernel: _forward_encode_impl.1
$region0: #{_forward_encode_impl.1}
  #allocation0 [shape = 'u32[]', space=smem, size = 0x4, offset = 0x4, fixed_abs, tag = 'smem constant byte address 0x4 - core index']
  #allocation1 [shape = 'u32[72,128]{1,0:T(1,128)}', space=vmem, size = 0x9000, scoped, tag = 'internal scratch']
  %s0 = inlined_call_operand.vmem [shape: bf16[16,128], index: 0, kind: input, shape index: {}]
  %s1 = inlined_call_operand.vmem [shape: bf16[16,128], index: 1, kind: input, shape index: {}]
  %s2 = inlined_call_operand.vmem [shape: bf16[128,128], index: 2, kind: input, shape index: {}]
  %s3 = inlined_call_operand.vmem [shape: f32[1,128], index: 3, kind: input, shape index: {}]
  %s4 = inlined_call_operand.hbm [shape: bf16[128,256], index: 4, kind: input, shape index: {}]
  %s5 = inlined_call_operand.vmem [shape: f32[1,256], index: 5, kind: input, shape index: {}]
  %s6 = inlined_call_operand.hbm [shape: bf16[4,256,256], index: 6, kind: input, shape index: {}]
  %s7 = inlined_call_operand.vmem [shape: f32[4,1,256], index: 7, kind: input, shape index: {}]
  %s8 = inlined_call_operand.hbm [shape: bf16[256,128], index: 8, kind: input, shape index: {}]
  %s9 = inlined_call_operand.vmem [shape: f32[1,128], index: 9, kind: input, shape index: {}]
  %s10 = inlined_call_operand.vmem [shape: f32[16,128], index: 10, kind: output, shape index: {}]
  %s11 = sld [smem:[#allocation0]]
  $region62: #{_forward_encode_impl.1} parent=0
    _
  %s13 = ssub.s32 1, %s11
  %s14 = scalar_select 0, %s13, %s11
  $region1: #{_forward_encode_impl.1} parent=0
    #allocation2 [shape = 'u8[65536]{0}', space=vmem, size = 0x10000, scoped, tag = 'input window, operand 4, single buffered']
    #allocation3 [shape = 's32[1]{0}', space=sflag, size = 0x4, scoped, tag = 'scoped memory for _forward_encode_impl.1']
    #allocation4 [shape = 'u8[524288]{0}', space=vmem, size = 0x80000, scoped, tag = 'input window, operand 6, single buffered']
    #allocation5 [shape = 's32[1]{0}', space=sflag, size = 0x4, scoped, tag = 'scoped memory for _forward_encode_impl.1']
    #allocation6 [shape = 'u8[65536]{0}', space=vmem, size = 0x10000, scoped, tag = 'input window, operand 8, single buffered']
    %15 = vsyncpa [#allocation3], 0
    %16 = vsyncpa [#allocation5], 0
    // Predicated region
    $region2: #{_forward_encode_impl.1} parent=1 // pred_check
      _
    $region3: #{_forward_encode_impl.1} parent=1 // pred_check_branch
      %18 = sbr.rel (0) target = $region5
    $region4: #{_forward_encode_impl.1} parent=1 // pred_region
      _
    $region5: #{_forward_encode_impl.1} parent=1 // pred_fallthru
      _
    // Predicated region
    $region6: #{_forward_encode_impl.1} parent=1 // pred_check
      _
    $region7: #{_forward_encode_impl.1} parent=1 // pred_check_branch
      %20 = sbr.rel (0) target = $region9
    $region8: #{_forward_encode_impl.1} parent=1 // pred_region
      _
    $region9: #{_forward_encode_impl.1} parent=1 // pred_fallthru
      _
    // Predicated region
    $region10: #{_forward_encode_impl.1} parent=1 // pred_check
      _
    $region11: #{_forward_encode_impl.1} parent=1 // pred_check_branch
      %22 = sbr.rel (0) target = $region13
    $region12: #{_forward_encode_impl.1} parent=1 // pred_region
      _
    $region13: #{_forward_encode_impl.1} parent=1 // pred_fallthru
      _
    // Predicated region
    $region14: #{_forward_encode_impl.1} parent=1 // pred_check
      _
    $region15: #{_forward_encode_impl.1} parent=1 // pred_check_branch
      %24 = sbr.rel (0) target = $region17
    $region16: #{_forward_encode_impl.1} parent=1 // pred_region
      _
    $region17: #{_forward_encode_impl.1} parent=1 // pred_fallthru
      _
    // Predicated region
    $region18: #{_forward_encode_impl.1} parent=1 // pred_check
      _
    $region19: #{_forward_encode_impl.1} parent=1 // pred_check_branch
      %26 = sbr.rel (0) target = $region21
    $region20: #{_forward_encode_impl.1} parent=1 // pred_region
      %28 = vsyncadd [#allocation3], 0
      %s29 = sshll.u32 %s4, 4
      %s30 = int_to_ptr.hbm [resolvable:$true] %s29
      %s31 = sshll.u32 [#allocation2], 4
      %s32 = int_to_ptr.vmem [resolvable:$true] %s31
      %37 = dma.hbm_to_vmem [thread:$0]  %s30, 2048, %s32, [#allocation3], 128, 128, 8
    $region21: #{_forward_encode_impl.1} parent=1 // pred_fallthru
      _
    // Predicated region
    $region22: #{_forward_encode_impl.1} parent=1 // pred_check
      _
    $region23: #{_forward_encode_impl.1} parent=1 // pred_check_branch
      %39 = sbr.rel (0) target = $region25
    $region24: #{_forward_encode_impl.1} parent=1 // pred_region
      _
    $region25: #{_forward_encode_impl.1} parent=1 // pred_fallthru
      _
    // Predicated region
    $region26: #{_forward_encode_impl.1} parent=1 // pred_check
      _
    $region27: #{_forward_encode_impl.1} parent=1 // pred_check_branch
      %41 = sbr.rel (0) target = $region29
    $region28: #{_forward_encode_impl.1} parent=1 // pred_region
      %43 = vsyncadd [#allocation5], 0
      %s44 = sshll.u32 %s6, 4
      %s45 = int_to_ptr.hbm [resolvable:$true] %s44
      %s46 = sshll.u32 [#allocation4], 4
      %s47 = int_to_ptr.vmem [resolvable:$true] %s46
      %52 = dma.hbm_to_vmem [thread:$0]  %s45, 16384, %s47, [#allocation5], 128, 128, 8
    $region29: #{_forward_encode_impl.1} parent=1 // pred_fallthru
      _
    // Predicated region
    $region30: #{_forward_encode_impl.1} parent=1 // pred_check
      _
    $region31: #{_forward_encode_impl.1} parent=1 // pred_check_branch
      %54 = sbr.rel (0) target = $region33
    $region32: #{_forward_encode_impl.1} parent=1 // pred_region
      _
    $region33: #{_forward_encode_impl.1} parent=1 // pred_fallthru
      _
    // Predicated region
    $region34: #{_forward_encode_impl.1} parent=1 // pred_check
      _
    $region35: #{_forward_encode_impl.1} parent=1 // pred_check_branch
      %56 = sbr.rel (0) target = $region37
    $region36: #{_forward_encode_impl.1} parent=1 // pred_region
      %58 = vsyncadd [#allocation5], 0
      %s59 = sshll.u32 %s8, 4
      %s60 = int_to_ptr.hbm [resolvable:$true] %s59
      %s61 = sshll.u32 [#allocation6], 4
      %s62 = int_to_ptr.vmem [resolvable:$true] %s61
      %67 = dma.hbm_to_vmem [thread:$0]  %s60, 2048, %s62, [#allocation5], 64, 64, 4
    $region37: #{_forward_encode_impl.1} parent=1 // pred_fallthru
      _
    // Predicated region
    $region38: #{_forward_encode_impl.1} parent=1 // pred_check
      _
    $region39: #{_forward_encode_impl.1} parent=1 // pred_check_branch
      %69 = sbr.rel (0) target = $region41
    $region40: #{_forward_encode_impl.1} parent=1 // pred_region
      _
    $region41: #{_forward_encode_impl.1} parent=1 // pred_fallthru
      _
    // Predicated region
    $region42: #{_forward_encode_impl.1} parent=1 // pred_check
      _
    $region43: #{_forward_encode_impl.1} parent=1 // pred_check_branch
      %71 = sbr.rel (0) target = $region45
    $region44: #{_forward_encode_impl.1} parent=1 // pred_region
      %73 = dma.done [#allocation3], 2048
    $region45: #{_forward_encode_impl.1} parent=1 // pred_fallthru
      _
    // Predicated region
    $region46: #{_forward_encode_impl.1} parent=1 // pred_check
      _
    $region47: #{_forward_encode_impl.1} parent=1 // pred_check_branch
      %75 = sbr.rel (0) target = $region49
    $region48: #{_forward_encode_impl.1} parent=1 // pred_region
      %77 = dma.done [#allocation5], 16384
    $region49: #{_forward_encode_impl.1} parent=1 // pred_fallthru
      _
    // Predicated region
    $region50: #{_forward_encode_impl.1} parent=1 // pred_check
      _
    $region51: #{_forward_encode_impl.1} parent=1 // pred_check_branch
      %79 = sbr.rel (0) target = $region53
    $region52: #{_forward_encode_impl.1} parent=1 // pred_region
      %81 = dma.done [#allocation5], 2048
    $region53: #{_forward_encode_impl.1} parent=1 // pred_fallthru
      _
    %v82 = vld [vmem:[%s0] sm:$0xf]
    %v83 = vld [vmem:[%s0 + $0x4] sm:$0xf]
    %v84 = vld [vmem:[%s2] sm:$0xf]
    %v85 = vld [vmem:[%s2 + $0x4] sm:$0xf]
    %v86 = vld [vmem:[%s2 + $0x8] sm:$0xf]
    %v87 = vld [vmem:[%s2 + $0xc] sm:$0xf]
    %v88 = vld [vmem:[%s2 + $0x10] sm:$0xf]
    %v89 = vld [vmem:[%s2 + $0x14] sm:$0xf]
    %v90 = vld [vmem:[%s2 + $0x18] sm:$0xf]
    %v91 = vld [vmem:[%s2 + $0x1c] sm:$0xf]
    %v92 = vld [vmem:[%s2 + $0x20] sm:$0xf]
    %v93 = vld [vmem:[%s2 + $0x24] sm:$0xf]
    %v94 = vld [vmem:[%s2 + $0x28] sm:$0xf]
    %v95 = vld [vmem:[%s2 + $0x2c] sm:$0xf]
    %v96 = vld [vmem:[%s2 + $0x30] sm:$0xf]
    %v97 = vld [vmem:[%s2 + $0x34] sm:$0xf]
    %v98 = vld [vmem:[%s2 + $0x38] sm:$0xf]
    %v99 = vld [vmem:[%s2 + $0x3c] sm:$0xf]
    %v100 = vld [vmem:[%s3] sm:$0x1]
    %v102 = vperm.slane %v100, 0
    %v106 = vunpack.c.l.b16 %v82
    %v107 = vunpack.c.l.b16 %v83
    %v108 = vpack.c.b16 %v107, %v106
    %v126 = vunpack.c.l.b16 %v84
    %v127 = vunpack.c.l.b16 %v85
    %v128 = vunpack.c.l.b16 %v86
    %v129 = vunpack.c.l.b16 %v87
    %v130 = vunpack.c.l.b16 %v88
    %v131 = vunpack.c.l.b16 %v89
    %v132 = vunpack.c.l.b16 %v90
    %v133 = vunpack.c.l.b16 %v91
    %v134 = vunpack.c.l.b16 %v92
    %v135 = vunpack.c.l.b16 %v93
    %v136 = vunpack.c.l.b16 %v94
    %v137 = vunpack.c.l.b16 %v95
    %v138 = vunpack.c.l.b16 %v96
    %v139 = vunpack.c.l.b16 %v97
    %v140 = vunpack.c.l.b16 %v98
    %v141 = vunpack.c.l.b16 %v99
    %v142 = vpack.c.b16 %v127, %v126
    %v143 = vpack.c.b16 %v129, %v128
    %v144 = vpack.c.b16 %v131, %v130
    %v145 = vpack.c.b16 %v133, %v132
    %v146 = vpack.c.b16 %v135, %v134
    %v147 = vpack.c.b16 %v137, %v136
    %v148 = vpack.c.b16 %v139, %v138
    %v149 = vpack.c.b16 %v141, %v140
    %158 = vmatpush.bf16.msra.mxu0 %v149
    %159 = vmatpush.bf16.msra.mxu0 %v148
    %160 = vmatpush.bf16.msra.mxu0 %v147
    %161 = vmatpush.bf16.msra.mxu0 %v146
    %162 = vmatpush.bf16.msra.mxu0 %v145
    %163 = vmatpush.bf16.msra.mxu0 %v144
    %164 = vmatpush.bf16.msra.mxu0 %v143
    %165 = vmatpush.bf16.msra.mxu0 %v142
    %166 = vmatmul.bf16.gmra.mxu0 %v108
    %v167 = vpop.f32.mrf.mxu0
    %v168 = vadd.f32 %v102, %v167
    %v169 = vpop.f32.mrf.mxu0
    %v170 = vadd.f32 %v102, %v169
    %171 = vdwg.mxu0
    %v172 = vtanh.pop %v168
    %v173 = vtanh.pop %v170
    %v174 = vld [vmem:[%s1] sm:$0xf]
    %v175 = vld [vmem:[%s1 + $0x4] sm:$0xf]
    %v176 = vunpack.c.l.bf16 %v174
    %v177 = vunpack.c.l.bf16 %v175
    %v178 = vadd.f32 %v172, %v176
    %v179 = vadd.f32 %v173, %v177
    %v180 = vpack.c.bf16 %v179, %v178
    %v181 = vld [vmem:[#allocation2] sm:$0xff]
    %v182 = vld [vmem:[#allocation2 + $0x8] sm:$0xff]
    %v183 = vld [vmem:[#allocation2 + $0x10] sm:$0xff]
    %v184 = vld [vmem:[#allocation2 + $0x18] sm:$0xff]
    %v185 = vld [vmem:[#allocation2 + $0x20] sm:$0xff]
    %v186 = vld [vmem:[#allocation2 + $0x28] sm:$0xff]
    %v187 = vld [vmem:[#allocation2 + $0x30] sm:$0xff]
    %v188 = vld [vmem:[#allocation2 + $0x38] sm:$0xff]
    %v189 = vld [vmem:[#allocation2 + $0x40] sm:$0xff]
    %v190 = vld [vmem:[#allocation2 + $0x48] sm:$0xff]
    %v191 = vld [vmem:[#allocation2 + $0x50] sm:$0xff]
    %v192 = vld [vmem:[#allocation2 + $0x58] sm:$0xff]
    %v193 = vld [vmem:[#allocation2 + $0x60] sm:$0xff]
    %v194 = vld [vmem:[#allocation2 + $0x68] sm:$0xff]
    %v195 = vld [vmem:[#allocation2 + $0x70] sm:$0xff]
    %v196 = vld [vmem:[#allocation2 + $0x78] sm:$0xff]
    %v197 = vld [vmem:[%s5] sm:$0x3]
    %v199 = vperm.slane %v197, 0
    %v200 = vperm.slane %v197, 1
    %v219 = vunpack.c.l.b16 %v181
    %v220 = vunpack.c.h.b16 %v181
    %v221 = vunpack.c.l.b16 %v182
    %v222 = vunpack.c.h.b16 %v182
    %v223 = vunpack.c.l.b16 %v183
    %v224 = vunpack.c.h.b16 %v183
    %v225 = vunpack.c.l.b16 %v184
    %v226 = vunpack.c.h.b16 %v184
    %v227 = vunpack.c.l.b16 %v185
    %v228 = vunpack.c.h.b16 %v185
    %v229 = vunpack.c.l.b16 %v186
    %v230 = vunpack.c.h.b16 %v186
    %v231 = vunpack.c.l.b16 %v187
    %v232 = vunpack.c.h.b16 %v187
    %v233 = vunpack.c.l.b16 %v188
    %v234 = vunpack.c.h.b16 %v188
    %v235 = vunpack.c.l.b16 %v189
    %v236 = vunpack.c.h.b16 %v189
    %v237 = vunpack.c.l.b16 %v190
    %v238 = vunpack.c.h.b16 %v190
    %v239 = vunpack.c.l.b16 %v191
    %v240 = vunpack.c.h.b16 %v191
    %v241 = vunpack.c.l.b16 %v192
    %v242 = vunpack.c.h.b16 %v192
    %v243 = vunpack.c.l.b16 %v193
    %v244 = vunpack.c.h.b16 %v193
    %v245 = vunpack.c.l.b16 %v194
    %v246 = vunpack.c.h.b16 %v194
    %v247 = vunpack.c.l.b16 %v195
    %v248 = vunpack.c.h.b16 %v195
    %v249 = vunpack.c.l.b16 %v196
    %v250 = vunpack.c.h.b16 %v196
    %v251 = vpack.c.b16 %v221, %v219
    %v252 = vpack.c.b16 %v222, %v220
    %v253 = vpack.c.b16 %v225, %v223
    %v254 = vpack.c.b16 %v226, %v224
    %v255 = vpack.c.b16 %v229, %v227
    %v256 = vpack.c.b16 %v230, %v228
    %v257 = vpack.c.b16 %v233, %v231
    %v258 = vpack.c.b16 %v234, %v232
    %v259 = vpack.c.b16 %v237, %v235
    %v260 = vpack.c.b16 %v238, %v236
    %v261 = vpack.c.b16 %v241, %v239
    %v262 = vpack.c.b16 %v242, %v240
    %v263 = vpack.c.b16 %v245, %v243
    %v264 = vpack.c.b16 %v246, %v244
    %v265 = vpack.c.b16 %v249, %v247
    %v266 = vpack.c.b16 %v250, %v248
    %283 = vmatpush.bf16.msra.mxu0 %v265
    %284 = vmatpush.bf16.msra.mxu0 %v263
    %285 = vmatpush.bf16.msra.mxu0 %v261
    %286 = vmatpush.bf16.msra.mxu0 %v259
    %287 = vmatpush.bf16.msra.mxu0 %v257
    %288 = vmatpush.bf16.msra.mxu0 %v255
    %289 = vmatpush.bf16.msra.mxu0 %v253
    %290 = vmatpush.bf16.msra.mxu0 %v251
    %291 = vmatmul.bf16.gmra.mxu0 %v180
    %v292 = vpop.f32.mrf.mxu0
    %v293 = vadd.f32 %v199, %v292
    %v294 = vpop.f32.mrf.mxu0
    %v295 = vadd.f32 %v199, %v294
    %296 = vdwg.mxu0
    %297 = vmatpush.bf16.msra.mxu0 %v266
    %298 = vmatpush.bf16.msra.mxu0 %v264
    %299 = vmatpush.bf16.msra.mxu0 %v262
    %300 = vmatpush.bf16.msra.mxu0 %v260
    %301 = vmatpush.bf16.msra.mxu0 %v258
    %302 = vmatpush.bf16.msra.mxu0 %v256
    %303 = vmatpush.bf16.msra.mxu0 %v254
    %304 = vmatpush.bf16.msra.mxu0 %v252
    %305 = vmatmul.bf16.gmra.mxu0 %v180
    %v306 = vpop.f32.mrf.mxu0
    %v307 = vadd.f32 %v200, %v306
    %v308 = vpop.f32.mrf.mxu0
    %v309 = vadd.f32 %v200, %v308
    %310 = vdwg.mxu0
    %vm311 = vcmp.ge.f32.partialorder %v293, 0.0
    %vm312 = vcmp.ge.f32.partialorder %v307, 0.0
    %vm313 = vcmp.ge.f32.partialorder %v295, 0.0
    %vm314 = vcmp.ge.f32.partialorder %v309, 0.0
    %v315 = vmul.f32 %v293, 0.1
    %v316 = vmul.f32 %v307, 0.1
    %v317 = vmul.f32 %v295, 0.1
    %v318 = vmul.f32 %v309, 0.1
    %v319 = vsel %vm311, %v293, %v315
    %v320 = vsel %vm312, %v307, %v316
    %v321 = vsel %vm313, %v295, %v317
    %v322 = vsel %vm314, %v309, %v318
    %v323 = vpack.c.bf16 %v321, %v319
    %v324 = vpack.c.bf16 %v322, %v320
    %v325 = vld [vmem:[#allocation4] sm:$0xff]
    %v326 = vld [vmem:[#allocation4 + $0x8] sm:$0xff]
    %v327 = vld [vmem:[#allocation4 + $0x10] sm:$0xff]
    %v328 = vld [vmem:[#allocation4 + $0x18] sm:$0xff]
    %v329 = vld [vmem:[#allocation4 + $0x20] sm:$0xff]
    %v330 = vld [vmem:[#allocation4 + $0x28] sm:$0xff]
    %v331 = vld [vmem:[#allocation4 + $0x30] sm:$0xff]
    %v332 = vld [vmem:[#allocation4 + $0x38] sm:$0xff]
    %v333 = vld [vmem:[#allocation4 + $0x40] sm:$0xff]
    %v334 = vld [vmem:[#allocation4 + $0x48] sm:$0xff]
    %v335 = vld [vmem:[#allocation4 + $0x50] sm:$0xff]
    %v336 = vld [vmem:[#allocation4 + $0x58] sm:$0xff]
    %v337 = vld [vmem:[#allocation4 + $0x60] sm:$0xff]
    %v338 = vld [vmem:[#allocation4 + $0x68] sm:$0xff]
    %v339 = vld [vmem:[#allocation4 + $0x70] sm:$0xff]
    %v340 = vld [vmem:[#allocation4 + $0x78] sm:$0xff]
    %v341 = vld [vmem:[#allocation4 + $0x80] sm:$0xff]
    %v342 = vld [vmem:[#allocation4 + $0x88] sm:$0xff]
    %v343 = vld [vmem:[#allocation4 + $0x90] sm:$0xff]
    %v344 = vld [vmem:[#allocation4 + $0x98] sm:$0xff]
    %v345 = vld [vmem:[#allocation4 + $0xa0] sm:$0xff]
    %v346 = vld [vmem:[#allocation4 + $0xa8] sm:$0xff]
    %v347 = vld [vmem:[#allocation4 + $0xb0] sm:$0xff]
    %v348 = vld [vmem:[#allocation4 + $0xb8] sm:$0xff]
    %v349 = vld [vmem:[#allocation4 + $0xc0] sm:$0xff]
    %v350 = vld [vmem:[#allocation4 + $0xc8] sm:$0xff]
    %v351 = vld [vmem:[#allocation4 + $0xd0] sm:$0xff]
    %v352 = vld [vmem:[#allocation4 + $0xd8] sm:$0xff]
    %v353 = vld [vmem:[#allocation4 + $0xe0] sm:$0xff]
    %v354 = vld [vmem:[#allocation4 + $0xe8] sm:$0xff]
    %v355 = vld [vmem:[#allocation4 + $0xf0] sm:$0xff]
    %v356 = vld [vmem:[#allocation4 + $0xf8] sm:$0xff]
    %v357 = vld [vmem:[%s7] sm:$0x3]
    %v359 = vperm.slane %v357, 0
    %v360 = vperm.slane %v357, 1
    %v395 = vunpack.c.l.b16 %v325
    %v396 = vunpack.c.h.b16 %v325
    %v397 = vunpack.c.l.b16 %v326
    %v398 = vunpack.c.h.b16 %v326
    %v399 = vunpack.c.l.b16 %v327
    %v400 = vunpack.c.h.b16 %v327
    %v401 = vunpack.c.l.b16 %v328
    %v402 = vunpack.c.h.b16 %v328
    %v403 = vunpack.c.l.b16 %v329
    %v404 = vunpack.c.h.b16 %v329
    %v405 = vunpack.c.l.b16 %v330
    %v406 = vunpack.c.h.b16 %v330
    %v407 = vunpack.c.l.b16 %v331
    %v408 = vunpack.c.h.b16 %v331
    %v409 = vunpack.c.l.b16 %v332
    %v410 = vunpack.c.h.b16 %v332
    %v411 = vunpack.c.l.b16 %v333
    %v412 = vunpack.c.h.b16 %v333
    %v413 = vunpack.c.l.b16 %v334
    %v414 = vunpack.c.h.b16 %v334
    %v415 = vunpack.c.l.b16 %v335
    %v416 = vunpack.c.h.b16 %v335
    %v417 = vunpack.c.l.b16 %v336
    %v418 = vunpack.c.h.b16 %v336
    %v419 = vunpack.c.l.b16 %v337
    %v420 = vunpack.c.h.b16 %v337
    %v421 = vunpack.c.l.b16 %v338
    %v422 = vunpack.c.h.b16 %v338
    %v423 = vunpack.c.l.b16 %v339
    %v424 = vunpack.c.h.b16 %v339
    %v425 = vunpack.c.l.b16 %v340
    %v426 = vunpack.c.h.b16 %v340
    %v427 = vunpack.c.l.b16 %v341
    %v428 = vunpack.c.h.b16 %v341
    %v429 = vunpack.c.l.b16 %v342
    %v430 = vunpack.c.h.b16 %v342
    %v431 = vunpack.c.l.b16 %v343
    %v432 = vunpack.c.h.b16 %v343
    %v433 = vunpack.c.l.b16 %v344
    %v434 = vunpack.c.h.b16 %v344
    %v435 = vunpack.c.l.b16 %v345
    %v436 = vunpack.c.h.b16 %v345
    %v437 = vunpack.c.l.b16 %v346
    %v438 = vunpack.c.h.b16 %v346
    %v439 = vunpack.c.l.b16 %v347
    %v440 = vunpack.c.h.b16 %v347
    %v441 = vunpack.c.l.b16 %v348
    %v442 = vunpack.c.h.b16 %v348
    %v443 = vunpack.c.l.b16 %v349
    %v444 = vunpack.c.h.b16 %v349
    %v445 = vunpack.c.l.b16 %v350
    %v446 = vunpack.c.h.b16 %v350
    %v447 = vunpack.c.l.b16 %v351
    %v448 = vunpack.c.h.b16 %v351
    %v449 = vunpack.c.l.b16 %v352
    %v450 = vunpack.c.h.b16 %v352
    %v451 = vunpack.c.l.b16 %v353
    %v452 = vunpack.c.h.b16 %v353
    %v453 = vunpack.c.l.b16 %v354
    %v454 = vunpack.c.h.b16 %v354
    %v455 = vunpack.c.l.b16 %v355
    %v456 = vunpack.c.h.b16 %v355
    %v457 = vunpack.c.l.b16 %v356
    %v458 = vunpack.c.h.b16 %v356
    %v459 = vpack.c.b16 %v397, %v395
    %v460 = vpack.c.b16 %v398, %v396
    %v461 = vpack.c.b16 %v401, %v399
    %v462 = vpack.c.b16 %v402, %v400
    %v463 = vpack.c.b16 %v405, %v403
    %v464 = vpack.c.b16 %v406, %v404
    %v465 = vpack.c.b16 %v409, %v407
    %v466 = vpack.c.b16 %v410, %v408
    %v467 = vpack.c.b16 %v413, %v411
    %v468 = vpack.c.b16 %v414, %v412
    %v469 = vpack.c.b16 %v417, %v415
    %v470 = vpack.c.b16 %v418, %v416
    %v471 = vpack.c.b16 %v421, %v419
    %v472 = vpack.c.b16 %v422, %v420
    %v473 = vpack.c.b16 %v425, %v423
    %v474 = vpack.c.b16 %v426, %v424
    %v475 = vpack.c.b16 %v429, %v427
    %v476 = vpack.c.b16 %v430, %v428
    %v477 = vpack.c.b16 %v433, %v431
    %v478 = vpack.c.b16 %v434, %v432
    %v479 = vpack.c.b16 %v437, %v435
    %v480 = vpack.c.b16 %v438, %v436
    %v481 = vpack.c.b16 %v441, %v439
    %v482 = vpack.c.b16 %v442, %v440
    %v483 = vpack.c.b16 %v445, %v443
    %v484 = vpack.c.b16 %v446, %v444
    %v485 = vpack.c.b16 %v449, %v447
    %v486 = vpack.c.b16 %v450, %v448
    %v487 = vpack.c.b16 %v453, %v451
    %v488 = vpack.c.b16 %v454, %v452
    %v489 = vpack.c.b16 %v457, %v455
    %v490 = vpack.c.b16 %v458, %v456
    %523 = vmatpush.bf16.msra.mxu0 %v473
    %524 = vmatpush.bf16.msra.mxu0 %v471
    %525 = vmatpush.bf16.msra.mxu0 %v469
    %526 = vmatpush.bf16.msra.mxu0 %v467
    %527 = vmatpush.bf16.msra.mxu0 %v465
    %528 = vmatpush.bf16.msra.mxu0 %v463
    %529 = vmatpush.bf16.msra.mxu0 %v461
    %530 = vmatpush.bf16.msra.mxu0 %v459
    %531 = vmatmul.bf16.gmra.mxu0 %v323
    %v532 = vpop.f32.mrf.mxu0
    %v533 = vadd.f32 %v359, %v532
    %v534 = vpop.f32.mrf.mxu0
    %v535 = vadd.f32 %v359, %v534
    %536 = vdwg.mxu0
    %537 = vmatpush.bf16.msra.mxu0 %v489
    %538 = vmatpush.bf16.msra.mxu0 %v487
    %539 = vmatpush.bf16.msra.mxu0 %v485
    %540 = vmatpush.bf16.msra.mxu0 %v483
    %541 = vmatpush.bf16.msra.mxu0 %v481
    %542 = vmatpush.bf16.msra.mxu0 %v479
    %543 = vmatpush.bf16.msra.mxu0 %v477
    %544 = vmatpush.bf16.msra.mxu0 %v475
    %545 = vmatmul.bf16.gmra.mxu0 %v324
    %v546 = vpop.f32.mrf.mxu0
    %v547 = vadd.f32 %v533, %v546
    %v548 = vpop.f32.mrf.mxu0
    %v549 = vadd.f32 %v535, %v548
    %550 = vdwg.mxu0
    %551 = vmatpush.bf16.msra.mxu0 %v474
    %552 = vmatpush.bf16.msra.mxu0 %v472
    %553 = vmatpush.bf16.msra.mxu0 %v470
    %554 = vmatpush.bf16.msra.mxu0 %v468
    %555 = vmatpush.bf16.msra.mxu0 %v466
    %556 = vmatpush.bf16.msra.mxu0 %v464
    %557 = vmatpush.bf16.msra.mxu0 %v462
    %558 = vmatpush.bf16.msra.mxu0 %v460
    %559 = vmatmul.bf16.gmra.mxu0 %v323
    %v560 = vpop.f32.mrf.mxu0
    %v561 = vadd.f32 %v360, %v560
    %v562 = vpop.f32.mrf.mxu0
    %v563 = vadd.f32 %v360, %v562
    %564 = vdwg.mxu0
    %565 = vmatpush.bf16.msra.mxu0 %v490
    %566 = vmatpush.bf16.msra.mxu0 %v488
    %567 = vmatpush.bf16.msra.mxu0 %v486
    %568 = vmatpush.bf16.msra.mxu0 %v484
    %569 = vmatpush.bf16.msra.mxu0 %v482
    %570 = vmatpush.bf16.msra.mxu0 %v480
    %571 = vmatpush.bf16.msra.mxu0 %v478
    %572 = vmatpush.bf16.msra.mxu0 %v476
    %573 = vmatmul.bf16.gmra.mxu0 %v324
    %v574 = vpop.f32.mrf.mxu0
    %v575 = vadd.f32 %v561, %v574
    %v576 = vpop.f32.mrf.mxu0
    %v577 = vadd.f32 %v563, %v576
    %578 = vdwg.mxu0
    %vm579 = vcmp.ge.f32.partialorder %v547, 0.0
    %vm580 = vcmp.ge.f32.partialorder %v575, 0.0
    %vm581 = vcmp.ge.f32.partialorder %v549, 0.0
    %vm582 = vcmp.ge.f32.partialorder %v577, 0.0
    %v583 = vmul.f32 %v547, 0.1
    %v584 = vmul.f32 %v575, 0.1
    %v585 = vmul.f32 %v549, 0.1
    %v586 = vmul.f32 %v577, 0.1
    %v587 = vsel %vm579, %v547, %v583
    %v588 = vsel %vm580, %v575, %v584
    %v589 = vsel %vm581, %v549, %v585
    %v590 = vsel %vm582, %v577, %v586
    %v591 = vpack.c.bf16 %v589, %v587
    %v592 = vpack.c.bf16 %v590, %v588
    %s593 = scalar_lea.vmem [#allocation4], 256
    %v594 = vld [vmem:[%s593] sm:$0xff]
    %v595 = vld [vmem:[%s593 + $0x8] sm:$0xff]
    %v596 = vld [vmem:[%s593 + $0x10] sm:$0xff]
    %v597 = vld [vmem:[%s593 + $0x18] sm:$0xff]
    %v598 = vld [vmem:[%s593 + $0x20] sm:$0xff]
    %v599 = vld [vmem:[%s593 + $0x28] sm:$0xff]
    %v600 = vld [vmem:[%s593 + $0x30] sm:$0xff]
    %v601 = vld [vmem:[%s593 + $0x38] sm:$0xff]
    %v602 = vld [vmem:[%s593 + $0x40] sm:$0xff]
    %v603 = vld [vmem:[%s593 + $0x48] sm:$0xff]
    %v604 = vld [vmem:[%s593 + $0x50] sm:$0xff]
    %v605 = vld [vmem:[%s593 + $0x58] sm:$0xff]
    %v606 = vld [vmem:[%s593 + $0x60] sm:$0xff]
    %v607 = vld [vmem:[%s593 + $0x68] sm:$0xff]
    %v608 = vld [vmem:[%s593 + $0x70] sm:$0xff]
    %v609 = vld [vmem:[%s593 + $0x78] sm:$0xff]
    %v610 = vld [vmem:[%s593 + $0x80] sm:$0xff]
    %v611 = vld [vmem:[%s593 + $0x88] sm:$0xff]
    %v612 = vld [vmem:[%s593 + $0x90] sm:$0xff]
    %v613 = vld [vmem:[%s593 + $0x98] sm:$0xff]
    %v614 = vld [vmem:[%s593 + $0xa0] sm:$0xff]
    %v615 = vld [vmem:[%s593 + $0xa8] sm:$0xff]
    %v616 = vld [vmem:[%s593 + $0xb0] sm:$0xff]
    %v617 = vld [vmem:[%s593 + $0xb8] sm:$0xff]
    %v618 = vld [vmem:[%s593 + $0xc0] sm:$0xff]
    %v619 = vld [vmem:[%s593 + $0xc8] sm:$0xff]
    %v620 = vld [vmem:[%s593 + $0xd0] sm:$0xff]
    %v621 = vld [vmem:[%s593 + $0xd8] sm:$0xff]
    %v622 = vld [vmem:[%s593 + $0xe0] sm:$0xff]
    %v623 = vld [vmem:[%s593 + $0xe8] sm:$0xff]
    %v624 = vld [vmem:[%s593 + $0xf0] sm:$0xff]
    %v625 = vld [vmem:[%s593 + $0xf8] sm:$0xff]
    %s626 = scalar_lea.vmem %s7, 2
    %v627 = vld [vmem:[%s626] sm:$0x3]
    %v629 = vperm.slane %v627, 0
    %v630 = vperm.slane %v627, 1
    %v665 = vunpack.c.l.b16 %v594
    %v666 = vunpack.c.h.b16 %v594
    %v667 = vunpack.c.l.b16 %v595
    %v668 = vunpack.c.h.b16 %v595
    %v669 = vunpack.c.l.b16 %v596
    %v670 = vunpack.c.h.b16 %v596
    %v671 = vunpack.c.l.b16 %v597
    %v672 = vunpack.c.h.b16 %v597
    %v673 = vunpack.c.l.b16 %v598
    %v674 = vunpack.c.h.b16 %v598
    %v675 = vunpack.c.l.b16 %v599
    %v676 = vunpack.c.h.b16 %v599
    %v677 = vunpack.c.l.b16 %v600
    %v678 = vunpack.c.h.b16 %v600
    %v679 = vunpack.c.l.b16 %v601
    %v680 = vunpack.c.h.b16 %v601
    %v681 = vunpack.c.l.b16 %v602
    %v682 = vunpack.c.h.b16 %v602
    %v683 = vunpack.c.l.b16 %v603
    %v684 = vunpack.c.h.b16 %v603
    %v685 = vunpack.c.l.b16 %v604
    %v686 = vunpack.c.h.b16 %v604
    %v687 = vunpack.c.l.b16 %v605
    %v688 = vunpack.c.h.b16 %v605
    %v689 = vunpack.c.l.b16 %v606
    %v690 = vunpack.c.h.b16 %v606
    %v691 = vunpack.c.l.b16 %v607
    %v692 = vunpack.c.h.b16 %v607
    %v693 = vunpack.c.l.b16 %v608
    %v694 = vunpack.c.h.b16 %v608
    %v695 = vunpack.c.l.b16 %v609
    %v696 = vunpack.c.h.b16 %v609
    %v697 = vunpack.c.l.b16 %v610
    %v698 = vunpack.c.h.b16 %v610
    %v699 = vunpack.c.l.b16 %v611
    %v700 = vunpack.c.h.b16 %v611
    %v701 = vunpack.c.l.b16 %v612
    %v702 = vunpack.c.h.b16 %v612
    %v703 = vunpack.c.l.b16 %v613
    %v704 = vunpack.c.h.b16 %v613
    %v705 = vunpack.c.l.b16 %v614
    %v706 = vunpack.c.h.b16 %v614
    %v707 = vunpack.c.l.b16 %v615
    %v708 = vunpack.c.h.b16 %v615
    %v709 = vunpack.c.l.b16 %v616
    %v710 = vunpack.c.h.b16 %v616
    %v711 = vunpack.c.l.b16 %v617
    %v712 = vunpack.c.h.b16 %v617
    %v713 = vunpack.c.l.b16 %v618
    %v714 = vunpack.c.h.b16 %v618
    %v715 = vunpack.c.l.b16 %v619
    %v716 = vunpack.c.h.b16 %v619
    %v717 = vunpack.c.l.b16 %v620
    %v718 = vunpack.c.h.b16 %v620
    %v719 = vunpack.c.l.b16 %v621
    %v720 = vunpack.c.h.b16 %v621
    %v721 = vunpack.c.l.b16 %v622
    %v722 = vunpack.c.h.b16 %v622
    %v723 = vunpack.c.l.b16 %v623
    %v724 = vunpack.c.h.b16 %v623
    %v725 = vunpack.c.l.b16 %v624
    %v726 = vunpack.c.h.b16 %v624
    %v727 = vunpack.c.l.b16 %v625
    %v728 = vunpack.c.h.b16 %v625
    %v729 = vpack.c.b16 %v667, %v665
    %v730 = vpack.c.b16 %v668, %v666
    %v731 = vpack.c.b16 %v671, %v669
    %v732 = vpack.c.b16 %v672, %v670
    %v733 = vpack.c.b16 %v675, %v673
    %v734 = vpack.c.b16 %v676, %v674
    %v735 = vpack.c.b16 %v679, %v677
    %v736 = vpack.c.b16 %v680, %v678
    %v737 = vpack.c.b16 %v683, %v681
    %v738 = vpack.c.b16 %v684, %v682
    %v739 = vpack.c.b16 %v687, %v685
    %v740 = vpack.c.b16 %v688, %v686
    %v741 = vpack.c.b16 %v691, %v689
    %v742 = vpack.c.b16 %v692, %v690
    %v743 = vpack.c.b16 %v695, %v693
    %v744 = vpack.c.b16 %v696, %v694
    %v745 = vpack.c.b16 %v699, %v697
    %v746 = vpack.c.b16 %v700, %v698
    %v747 = vpack.c.b16 %v703, %v701
    %v748 = vpack.c.b16 %v704, %v702
    %v749 = vpack.c.b16 %v707, %v705
    %v750 = vpack.c.b16 %v708, %v706
    %v751 = vpack.c.b16 %v711, %v709
    %v752 = vpack.c.b16 %v712, %v710
    %v753 = vpack.c.b16 %v715, %v713
    %v754 = vpack.c.b16 %v716, %v714
    %v755 = vpack.c.b16 %v719, %v717
    %v756 = vpack.c.b16 %v720, %v718
    %v757 = vpack.c.b16 %v723, %v721
    %v758 = vpack.c.b16 %v724, %v722
    %v759 = vpack.c.b16 %v727, %v725
    %v760 = vpack.c.b16 %v728, %v726
    %793 = vmatpush.bf16.msra.mxu0 %v743
    %794 = vmatpush.bf16.msra.mxu0 %v741
    %795 = vmatpush.bf16.msra.mxu0 %v739
    %796 = vmatpush.bf16.msra.mxu0 %v737
    %797 = vmatpush.bf16.msra.mxu0 %v735
    %798 = vmatpush.bf16.msra.mxu0 %v733
    %799 = vmatpush.bf16.msra.mxu0 %v731
    %800 = vmatpush.bf16.msra.mxu0 %v729
    %801 = vmatmul.bf16.gmra.mxu0 %v591
    %v802 = vpop.f32.mrf.mxu0
    %v803 = vadd.f32 %v629, %v802
    %v804 = vpop.f32.mrf.mxu0
    %v805 = vadd.f32 %v629, %v804
    %806 = vdwg.mxu0
    %807 = vmatpush.bf16.msra.mxu0 %v759
    %808 = vmatpush.bf16.msra.mxu0 %v757
    %809 = vmatpush.bf16.msra.mxu0 %v755
    %810 = vmatpush.bf16.msra.mxu0 %v753
    %811 = vmatpush.bf16.msra.mxu0 %v751
    %812 = vmatpush.bf16.msra.mxu0 %v749
    %813 = vmatpush.bf16.msra.mxu0 %v747
    %814 = vmatpush.bf16.msra.mxu0 %v745
    %815 = vmatmul.bf16.gmra.mxu0 %v592
    %v816 = vpop.f32.mrf.mxu0
    %v817 = vadd.f32 %v803, %v816
    %v818 = vpop.f32.mrf.mxu0
    %v819 = vadd.f32 %v805, %v818
    %820 = vdwg.mxu0
    %821 = vmatpush.bf16.msra.mxu0 %v744
    %822 = vmatpush.bf16.msra.mxu0 %v742
    %823 = vmatpush.bf16.msra.mxu0 %v740
    %824 = vmatpush.bf16.msra.mxu0 %v738
    %825 = vmatpush.bf16.msra.mxu0 %v736
    %826 = vmatpush.bf16.msra.mxu0 %v734
    %827 = vmatpush.bf16.msra.mxu0 %v732
    %828 = vmatpush.bf16.msra.mxu0 %v730
    %829 = vmatmul.bf16.gmra.mxu0 %v591
    %v830 = vpop.f32.mrf.mxu0
    %v831 = vadd.f32 %v630, %v830
    %v832 = vpop.f32.mrf.mxu0
    %v833 = vadd.f32 %v630, %v832
    %834 = vdwg.mxu0
    %835 = vmatpush.bf16.msra.mxu0 %v760
    %836 = vmatpush.bf16.msra.mxu0 %v758
    %837 = vmatpush.bf16.msra.mxu0 %v756
    %838 = vmatpush.bf16.msra.mxu0 %v754
    %839 = vmatpush.bf16.msra.mxu0 %v752
    %840 = vmatpush.bf16.msra.mxu0 %v750
    %841 = vmatpush.bf16.msra.mxu0 %v748
    %842 = vmatpush.bf16.msra.mxu0 %v746
    %843 = vmatmul.bf16.gmra.mxu0 %v592
    %v844 = vpop.f32.mrf.mxu0
    %v845 = vadd.f32 %v831, %v844
    %v846 = vpop.f32.mrf.mxu0
    %v847 = vadd.f32 %v833, %v846
    %848 = vdwg.mxu0
    %vm849 = vcmp.ge.f32.partialorder %v817, 0.0
    %vm850 = vcmp.ge.f32.partialorder %v845, 0.0
    %vm851 = vcmp.ge.f32.partialorder %v819, 0.0
    %vm852 = vcmp.ge.f32.partialorder %v847, 0.0
    %v853 = vmul.f32 %v817, 0.1
    %v854 = vmul.f32 %v845, 0.1
    %v855 = vmul.f32 %v819, 0.1
    %v856 = vmul.f32 %v847, 0.1
    %v857 = vsel %vm849, %v817, %v853
    %v858 = vsel %vm850, %v845, %v854
    %v859 = vsel %vm851, %v819, %v855
    %v860 = vsel %vm852, %v847, %v856
    %v861 = vpack.c.bf16 %v859, %v857
    %v862 = vpack.c.bf16 %v860, %v858
    %s863 = scalar_lea.vmem [#allocation4], 512
    %v864 = vld [vmem:[%s863] sm:$0xff]
    %v865 = vld [vmem:[%s863 + $0x8] sm:$0xff]
    %v866 = vld [vmem:[%s863 + $0x10] sm:$0xff]
    %v867 = vld [vmem:[%s863 + $0x18] sm:$0xff]
    %v868 = vld [vmem:[%s863 + $0x20] sm:$0xff]
    %v869 = vld [vmem:[%s863 + $0x28] sm:$0xff]
    %v870 = vld [vmem:[%s863 + $0x30] sm:$0xff]
    %v871 = vld [vmem:[%s863 + $0x38] sm:$0xff]
    %v872 = vld [vmem:[%s863 + $0x40] sm:$0xff]
    %v873 = vld [vmem:[%s863 + $0x48] sm:$0xff]
    %v874 = vld [vmem:[%s863 + $0x50] sm:$0xff]
    %v875 = vld [vmem:[%s863 + $0x58] sm:$0xff]
    %v876 = vld [vmem:[%s863 + $0x60] sm:$0xff]
    %v877 = vld [vmem:[%s863 + $0x68] sm:$0xff]
    %v878 = vld [vmem:[%s863 + $0x70] sm:$0xff]
    %v879 = vld [vmem:[%s863 + $0x78] sm:$0xff]
    %v880 = vld [vmem:[%s863 + $0x80] sm:$0xff]
    %v881 = vld [vmem:[%s863 + $0x88] sm:$0xff]
    %v882 = vld [vmem:[%s863 + $0x90] sm:$0xff]
    %v883 = vld [vmem:[%s863 + $0x98] sm:$0xff]
    %v884 = vld [vmem:[%s863 + $0xa0] sm:$0xff]
    %v885 = vld [vmem:[%s863 + $0xa8] sm:$0xff]
    %v886 = vld [vmem:[%s863 + $0xb0] sm:$0xff]
    %v887 = vld [vmem:[%s863 + $0xb8] sm:$0xff]
    %v888 = vld [vmem:[%s863 + $0xc0] sm:$0xff]
    %v889 = vld [vmem:[%s863 + $0xc8] sm:$0xff]
    %v890 = vld [vmem:[%s863 + $0xd0] sm:$0xff]
    %v891 = vld [vmem:[%s863 + $0xd8] sm:$0xff]
    %v892 = vld [vmem:[%s863 + $0xe0] sm:$0xff]
    %v893 = vld [vmem:[%s863 + $0xe8] sm:$0xff]
    %v894 = vld [vmem:[%s863 + $0xf0] sm:$0xff]
    %v895 = vld [vmem:[%s863 + $0xf8] sm:$0xff]
    %s896 = scalar_lea.vmem %s7, 4
    %v897 = vld [vmem:[%s896] sm:$0x3]
    %v899 = vperm.slane %v897, 0
    %v900 = vperm.slane %v897, 1
    %v935 = vunpack.c.l.b16 %v864
    %v936 = vunpack.c.h.b16 %v864
    %v937 = vunpack.c.l.b16 %v865
    %v938 = vunpack.c.h.b16 %v865
    %v939 = vunpack.c.l.b16 %v866
    %v940 = vunpack.c.h.b16 %v866
    %v941 = vunpack.c.l.b16 %v867
    %v942 = vunpack.c.h.b16 %v867
    %v943 = vunpack.c.l.b16 %v868
    %v944 = vunpack.c.h.b16 %v868
    %v945 = vunpack.c.l.b16 %v869
    %v946 = vunpack.c.h.b16 %v869
    %v947 = vunpack.c.l.b16 %v870
    %v948 = vunpack.c.h.b16 %v870
    %v949 = vunpack.c.l.b16 %v871
    %v950 = vunpack.c.h.b16 %v871
    %v951 = vunpack.c.l.b16 %v872
    %v952 = vunpack.c.h.b16 %v872
    %v953 = vunpack.c.l.b16 %v873
    %v954 = vunpack.c.h.b16 %v873
    %v955 = vunpack.c.l.b16 %v874
    %v956 = vunpack.c.h.b16 %v874
    %v957 = vunpack.c.l.b16 %v875
    %v958 = vunpack.c.h.b16 %v875
    %v959 = vunpack.c.l.b16 %v876
    %v960 = vunpack.c.h.b16 %v876
    %v961 = vunpack.c.l.b16 %v877
    %v962 = vunpack.c.h.b16 %v877
    %v963 = vunpack.c.l.b16 %v878
    %v964 = vunpack.c.h.b16 %v878
    %v965 = vunpack.c.l.b16 %v879
    %v966 = vunpack.c.h.b16 %v879
    %v967 = vunpack.c.l.b16 %v880
    %v968 = vunpack.c.h.b16 %v880
    %v969 = vunpack.c.l.b16 %v881
    %v970 = vunpack.c.h.b16 %v881
    %v971 = vunpack.c.l.b16 %v882
    %v972 = vunpack.c.h.b16 %v882
    %v973 = vunpack.c.l.b16 %v883
    %v974 = vunpack.c.h.b16 %v883
    %v975 = vunpack.c.l.b16 %v884
    %v976 = vunpack.c.h.b16 %v884
    %v977 = vunpack.c.l.b16 %v885
    %v978 = vunpack.c.h.b16 %v885
    %v979 = vunpack.c.l.b16 %v886
    %v980 = vunpack.c.h.b16 %v886
    %v981 = vunpack.c.l.b16 %v887
    %v982 = vunpack.c.h.b16 %v887
    %v983 = vunpack.c.l.b16 %v888
    %v984 = vunpack.c.h.b16 %v888
    %v985 = vunpack.c.l.b16 %v889
    %v986 = vunpack.c.h.b16 %v889
    %v987 = vunpack.c.l.b16 %v890
    %v988 = vunpack.c.h.b16 %v890
    %v989 = vunpack.c.l.b16 %v891
    %v990 = vunpack.c.h.b16 %v891
    %v991 = vunpack.c.l.b16 %v892
    %v992 = vunpack.c.h.b16 %v892
    %v993 = vunpack.c.l.b16 %v893
    %v994 = vunpack.c.h.b16 %v893
    %v995 = vunpack.c.l.b16 %v894
    %v996 = vunpack.c.h.b16 %v894
    %v997 = vunpack.c.l.b16 %v895
    %v998 = vunpack.c.h.b16 %v895
    %v999 = vpack.c.b16 %v937, %v935
    %v1000 = vpack.c.b16 %v938, %v936
    %v1001 = vpack.c.b16 %v941, %v939
    %v1002 = vpack.c.b16 %v942, %v940
    %v1003 = vpack.c.b16 %v945, %v943
    %v1004 = vpack.c.b16 %v946, %v944
    %v1005 = vpack.c.b16 %v949, %v947
    %v1006 = vpack.c.b16 %v950, %v948
    %v1007 = vpack.c.b16 %v953, %v951
    %v1008 = vpack.c.b16 %v954, %v952
    %v1009 = vpack.c.b16 %v957, %v955
    %v1010 = vpack.c.b16 %v958, %v956
    %v1011 = vpack.c.b16 %v961, %v959
    %v1012 = vpack.c.b16 %v962, %v960
    %v1013 = vpack.c.b16 %v965, %v963
    %v1014 = vpack.c.b16 %v966, %v964
    %v1015 = vpack.c.b16 %v969, %v967
    %v1016 = vpack.c.b16 %v970, %v968
    %v1017 = vpack.c.b16 %v973, %v971
    %v1018 = vpack.c.b16 %v974, %v972
    %v1019 = vpack.c.b16 %v977, %v975
    %v1020 = vpack.c.b16 %v978, %v976
    %v1021 = vpack.c.b16 %v981, %v979
    %v1022 = vpack.c.b16 %v982, %v980
    %v1023 = vpack.c.b16 %v985, %v983
    %v1024 = vpack.c.b16 %v986, %v984
    %v1025 = vpack.c.b16 %v989, %v987
    %v1026 = vpack.c.b16 %v990, %v988
    %v1027 = vpack.c.b16 %v993, %v991
    %v1028 = vpack.c.b16 %v994, %v992
    %v1029 = vpack.c.b16 %v997, %v995
    %v1030 = vpack.c.b16 %v998, %v996
    %1063 = vmatpush.bf16.msra.mxu0 %v1013
    %1064 = vmatpush.bf16.msra.mxu0 %v1011
    %1065 = vmatpush.bf16.msra.mxu0 %v1009
    %1066 = vmatpush.bf16.msra.mxu0 %v1007
    %1067 = vmatpush.bf16.msra.mxu0 %v1005
    %1068 = vmatpush.bf16.msra.mxu0 %v1003
    %1069 = vmatpush.bf16.msra.mxu0 %v1001
    %1070 = vmatpush.bf16.msra.mxu0 %v999
    %1071 = vmatmul.bf16.gmra.mxu0 %v861
    %v1072 = vpop.f32.mrf.mxu0
    %v1073 = vadd.f32 %v899, %v1072
    %v1074 = vpop.f32.mrf.mxu0
    %v1075 = vadd.f32 %v899, %v1074
    %1076 = vdwg.mxu0
    %1077 = vmatpush.bf16.msra.mxu0 %v1029
    %1078 = vmatpush.bf16.msra.mxu0 %v1027
    %1079 = vmatpush.bf16.msra.mxu0 %v1025
    %1080 = vmatpush.bf16.msra.mxu0 %v1023
    %1081 = vmatpush.bf16.msra.mxu0 %v1021
    %1082 = vmatpush.bf16.msra.mxu0 %v1019
    %1083 = vmatpush.bf16.msra.mxu0 %v1017
    %1084 = vmatpush.bf16.msra.mxu0 %v1015
    %1085 = vmatmul.bf16.gmra.mxu0 %v862
    %v1086 = vpop.f32.mrf.mxu0
    %v1087 = vadd.f32 %v1073, %v1086
    %v1088 = vpop.f32.mrf.mxu0
    %v1089 = vadd.f32 %v1075, %v1088
    %1090 = vdwg.mxu0
    %1091 = vmatpush.bf16.msra.mxu0 %v1014
    %1092 = vmatpush.bf16.msra.mxu0 %v1012
    %1093 = vmatpush.bf16.msra.mxu0 %v1010
    %1094 = vmatpush.bf16.msra.mxu0 %v1008
    %1095 = vmatpush.bf16.msra.mxu0 %v1006
    %1096 = vmatpush.bf16.msra.mxu0 %v1004
    %1097 = vmatpush.bf16.msra.mxu0 %v1002
    %1098 = vmatpush.bf16.msra.mxu0 %v1000
    %1099 = vmatmul.bf16.gmra.mxu0 %v861
    %v1100 = vpop.f32.mrf.mxu0
    %v1101 = vadd.f32 %v900, %v1100
    %v1102 = vpop.f32.mrf.mxu0
    %v1103 = vadd.f32 %v900, %v1102
    %1104 = vdwg.mxu0
    %1105 = vmatpush.bf16.msra.mxu0 %v1030
    %1106 = vmatpush.bf16.msra.mxu0 %v1028
    %1107 = vmatpush.bf16.msra.mxu0 %v1026
    %1108 = vmatpush.bf16.msra.mxu0 %v1024
    %1109 = vmatpush.bf16.msra.mxu0 %v1022
    %1110 = vmatpush.bf16.msra.mxu0 %v1020
    %1111 = vmatpush.bf16.msra.mxu0 %v1018
    %1112 = vmatpush.bf16.msra.mxu0 %v1016
    %1113 = vmatmul.bf16.gmra.mxu0 %v862
    %v1114 = vpop.f32.mrf.mxu0
    %v1115 = vadd.f32 %v1101, %v1114
    %v1116 = vpop.f32.mrf.mxu0
    %v1117 = vadd.f32 %v1103, %v1116
    %1118 = vdwg.mxu0
    %vm1119 = vcmp.ge.f32.partialorder %v1087, 0.0
    %vm1120 = vcmp.ge.f32.partialorder %v1115, 0.0
    %vm1121 = vcmp.ge.f32.partialorder %v1089, 0.0
    %vm1122 = vcmp.ge.f32.partialorder %v1117, 0.0
    %v1123 = vmul.f32 %v1087, 0.1
    %v1124 = vmul.f32 %v1115, 0.1
    %v1125 = vmul.f32 %v1089, 0.1
    %v1126 = vmul.f32 %v1117, 0.1
    %v1127 = vsel %vm1119, %v1087, %v1123
    %v1128 = vsel %vm1120, %v1115, %v1124
    %v1129 = vsel %vm1121, %v1089, %v1125
    %v1130 = vsel %vm1122, %v1117, %v1126
    %v1131 = vpack.c.bf16 %v1129, %v1127
    %v1132 = vpack.c.bf16 %v1130, %v1128
    %s1133 = scalar_lea.vmem [#allocation4], 768
    %v1134 = vld [vmem:[%s1133] sm:$0xff]
    %v1135 = vld [vmem:[%s1133 + $0x8] sm:$0xff]
    %v1136 = vld [vmem:[%s1133 + $0x10] sm:$0xff]
    %v1137 = vld [vmem:[%s1133 + $0x18] sm:$0xff]
    %v1138 = vld [vmem:[%s1133 + $0x20] sm:$0xff]
    %v1139 = vld [vmem:[%s1133 + $0x28] sm:$0xff]
    %v1140 = vld [vmem:[%s1133 + $0x30] sm:$0xff]
    %v1141 = vld [vmem:[%s1133 + $0x38] sm:$0xff]
    %v1142 = vld [vmem:[%s1133 + $0x40] sm:$0xff]
    %v1143 = vld [vmem:[%s1133 + $0x48] sm:$0xff]
    %v1144 = vld [vmem:[%s1133 + $0x50] sm:$0xff]
    %v1145 = vld [vmem:[%s1133 + $0x58] sm:$0xff]
    %v1146 = vld [vmem:[%s1133 + $0x60] sm:$0xff]
    %v1147 = vld [vmem:[%s1133 + $0x68] sm:$0xff]
    %v1148 = vld [vmem:[%s1133 + $0x70] sm:$0xff]
    %v1149 = vld [vmem:[%s1133 + $0x78] sm:$0xff]
    %v1150 = vld [vmem:[%s1133 + $0x80] sm:$0xff]
    %v1151 = vld [vmem:[%s1133 + $0x88] sm:$0xff]
    %v1152 = vld [vmem:[%s1133 + $0x90] sm:$0xff]
    %v1153 = vld [vmem:[%s1133 + $0x98] sm:$0xff]
    %v1154 = vld [vmem:[%s1133 + $0xa0] sm:$0xff]
    %v1155 = vld [vmem:[%s1133 + $0xa8] sm:$0xff]
    %v1156 = vld [vmem:[%s1133 + $0xb0] sm:$0xff]
    %v1157 = vld [vmem:[%s1133 + $0xb8] sm:$0xff]
    %v1158 = vld [vmem:[%s1133 + $0xc0] sm:$0xff]
    %v1159 = vld [vmem:[%s1133 + $0xc8] sm:$0xff]
    %v1160 = vld [vmem:[%s1133 + $0xd0] sm:$0xff]
    %v1161 = vld [vmem:[%s1133 + $0xd8] sm:$0xff]
    %v1162 = vld [vmem:[%s1133 + $0xe0] sm:$0xff]
    %v1163 = vld [vmem:[%s1133 + $0xe8] sm:$0xff]
    %v1164 = vld [vmem:[%s1133 + $0xf0] sm:$0xff]
    %v1165 = vld [vmem:[%s1133 + $0xf8] sm:$0xff]
    %s1166 = scalar_lea.vmem %s7, 6
    %v1167 = vld [vmem:[%s1166] sm:$0x3]
    %v1169 = vperm.slane %v1167, 0
    %v1170 = vperm.slane %v1167, 1
    %v1205 = vunpack.c.l.b16 %v1134
    %v1206 = vunpack.c.h.b16 %v1134
    %v1207 = vunpack.c.l.b16 %v1135
    %v1208 = vunpack.c.h.b16 %v1135
    %v1209 = vunpack.c.l.b16 %v1136
    %v1210 = vunpack.c.h.b16 %v1136
    %v1211 = vunpack.c.l.b16 %v1137
    %v1212 = vunpack.c.h.b16 %v1137
    %v1213 = vunpack.c.l.b16 %v1138
    %v1214 = vunpack.c.h.b16 %v1138
    %v1215 = vunpack.c.l.b16 %v1139
    %v1216 = vunpack.c.h.b16 %v1139
    %v1217 = vunpack.c.l.b16 %v1140
    %v1218 = vunpack.c.h.b16 %v1140
    %v1219 = vunpack.c.l.b16 %v1141
    %v1220 = vunpack.c.h.b16 %v1141
    %v1221 = vunpack.c.l.b16 %v1142
    %v1222 = vunpack.c.h.b16 %v1142
    %v1223 = vunpack.c.l.b16 %v1143
    %v1224 = vunpack.c.h.b16 %v1143
    %v1225 = vunpack.c.l.b16 %v1144
    %v1226 = vunpack.c.h.b16 %v1144
    %v1227 = vunpack.c.l.b16 %v1145
    %v1228 = vunpack.c.h.b16 %v1145
    %v1229 = vunpack.c.l.b16 %v1146
    %v1230 = vunpack.c.h.b16 %v1146
    %v1231 = vunpack.c.l.b16 %v1147
    %v1232 = vunpack.c.h.b16 %v1147
    %v1233 = vunpack.c.l.b16 %v1148
    %v1234 = vunpack.c.h.b16 %v1148
    %v1235 = vunpack.c.l.b16 %v1149
    %v1236 = vunpack.c.h.b16 %v1149
    %v1237 = vunpack.c.l.b16 %v1150
    %v1238 = vunpack.c.h.b16 %v1150
    %v1239 = vunpack.c.l.b16 %v1151
    %v1240 = vunpack.c.h.b16 %v1151
    %v1241 = vunpack.c.l.b16 %v1152
    %v1242 = vunpack.c.h.b16 %v1152
    %v1243 = vunpack.c.l.b16 %v1153
    %v1244 = vunpack.c.h.b16 %v1153
    %v1245 = vunpack.c.l.b16 %v1154
    %v1246 = vunpack.c.h.b16 %v1154
    %v1247 = vunpack.c.l.b16 %v1155
    %v1248 = vunpack.c.h.b16 %v1155
    %v1249 = vunpack.c.l.b16 %v1156
    %v1250 = vunpack.c.h.b16 %v1156
    %v1251 = vunpack.c.l.b16 %v1157
    %v1252 = vunpack.c.h.b16 %v1157
    %v1253 = vunpack.c.l.b16 %v1158
    %v1254 = vunpack.c.h.b16 %v1158
    %v1255 = vunpack.c.l.b16 %v1159
    %v1256 = vunpack.c.h.b16 %v1159
    %v1257 = vunpack.c.l.b16 %v1160
    %v1258 = vunpack.c.h.b16 %v1160
    %v1259 = vunpack.c.l.b16 %v1161
    %v1260 = vunpack.c.h.b16 %v1161
    %v1261 = vunpack.c.l.b16 %v1162
    %v1262 = vunpack.c.h.b16 %v1162
    %v1263 = vunpack.c.l.b16 %v1163
    %v1264 = vunpack.c.h.b16 %v1163
    %v1265 = vunpack.c.l.b16 %v1164
    %v1266 = vunpack.c.h.b16 %v1164
    %v1267 = vunpack.c.l.b16 %v1165
    %v1268 = vunpack.c.h.b16 %v1165
    %v1269 = vpack.c.b16 %v1207, %v1205
    %v1270 = vpack.c.b16 %v1208, %v1206
    %v1271 = vpack.c.b16 %v1211, %v1209
    %v1272 = vpack.c.b16 %v1212, %v1210
    %v1273 = vpack.c.b16 %v1215, %v1213
    %v1274 = vpack.c.b16 %v1216, %v1214
    %v1275 = vpack.c.b16 %v1219, %v1217
    %v1276 = vpack.c.b16 %v1220, %v1218
    %v1277 = vpack.c.b16 %v1223, %v1221
    %v1278 = vpack.c.b16 %v1224, %v1222
    %v1279 = vpack.c.b16 %v1227, %v1225
    %v1280 = vpack.c.b16 %v1228, %v1226
    %v1281 = vpack.c.b16 %v1231, %v1229
    %v1282 = vpack.c.b16 %v1232, %v1230
    %v1283 = vpack.c.b16 %v1235, %v1233
    %v1284 = vpack.c.b16 %v1236, %v1234
    %v1285 = vpack.c.b16 %v1239, %v1237
    %v1286 = vpack.c.b16 %v1240, %v1238
    %v1287 = vpack.c.b16 %v1243, %v1241
    %v1288 = vpack.c.b16 %v1244, %v1242
    %v1289 = vpack.c.b16 %v1247, %v1245
    %v1290 = vpack.c.b16 %v1248, %v1246
    %v1291 = vpack.c.b16 %v1251, %v1249
    %v1292 = vpack.c.b16 %v1252, %v1250
    %v1293 = vpack.c.b16 %v1255, %v1253
    %v1294 = vpack.c.b16 %v1256, %v1254
    %v1295 = vpack.c.b16 %v1259, %v1257
    %v1296 = vpack.c.b16 %v1260, %v1258
    %v1297 = vpack.c.b16 %v1263, %v1261
    %v1298 = vpack.c.b16 %v1264, %v1262
    %v1299 = vpack.c.b16 %v1267, %v1265
    %v1300 = vpack.c.b16 %v1268, %v1266
    %1333 = vmatpush.bf16.msra.mxu0 %v1283
    %1334 = vmatpush.bf16.msra.mxu0 %v1281
    %1335 = vmatpush.bf16.msra.mxu0 %v1279
    %1336 = vmatpush.bf16.msra.mxu0 %v1277
    %1337 = vmatpush.bf16.msra.mxu0 %v1275
    %1338 = vmatpush.bf16.msra.mxu0 %v1273
    %1339 = vmatpush.bf16.msra.mxu0 %v1271
    %1340 = vmatpush.bf16.msra.mxu0 %v1269
    %1341 = vmatmul.bf16.gmra.mxu0 %v1131
    %v1342 = vpop.f32.mrf.mxu0
    %v1343 = vadd.f32 %v1169, %v1342
    %v1344 = vpop.f32.mrf.mxu0
    %v1345 = vadd.f32 %v1169, %v1344
    %1346 = vdwg.mxu0
    %1347 = vmatpush.bf16.msra.mxu0 %v1299
    %1348 = vmatpush.bf16.msra.mxu0 %v1297
    %1349 = vmatpush.bf16.msra.mxu0 %v1295
    %1350 = vmatpush.bf16.msra.mxu0 %v1293
    %1351 = vmatpush.bf16.msra.mxu0 %v1291
    %1352 = vmatpush.bf16.msra.mxu0 %v1289
    %1353 = vmatpush.bf16.msra.mxu0 %v1287
    %1354 = vmatpush.bf16.msra.mxu0 %v1285
    %1355 = vmatmul.bf16.gmra.mxu0 %v1132
    %v1356 = vpop.f32.mrf.mxu0
    %v1357 = vadd.f32 %v1343, %v1356
    %v1358 = vpop.f32.mrf.mxu0
    %v1359 = vadd.f32 %v1345, %v1358
    %1360 = vdwg.mxu0
    %1361 = vmatpush.bf16.msra.mxu0 %v1284
    %1362 = vmatpush.bf16.msra.mxu0 %v1282
    %1363 = vmatpush.bf16.msra.mxu0 %v1280
    %1364 = vmatpush.bf16.msra.mxu0 %v1278
    %1365 = vmatpush.bf16.msra.mxu0 %v1276
    %1366 = vmatpush.bf16.msra.mxu0 %v1274
    %1367 = vmatpush.bf16.msra.mxu0 %v1272
    %1368 = vmatpush.bf16.msra.mxu0 %v1270
    %1369 = vmatmul.bf16.gmra.mxu0 %v1131
    %v1370 = vpop.f32.mrf.mxu0
    %v1371 = vadd.f32 %v1170, %v1370
    %v1372 = vpop.f32.mrf.mxu0
    %v1373 = vadd.f32 %v1170, %v1372
    %1374 = vdwg.mxu0
    %1375 = vmatpush.bf16.msra.mxu0 %v1300
    %1376 = vmatpush.bf16.msra.mxu0 %v1298
    %1377 = vmatpush.bf16.msra.mxu0 %v1296
    %1378 = vmatpush.bf16.msra.mxu0 %v1294
    %1379 = vmatpush.bf16.msra.mxu0 %v1292
    %1380 = vmatpush.bf16.msra.mxu0 %v1290
    %1381 = vmatpush.bf16.msra.mxu0 %v1288
    %1382 = vmatpush.bf16.msra.mxu0 %v1286
    %1383 = vmatmul.bf16.gmra.mxu0 %v1132
    %v1384 = vpop.f32.mrf.mxu0
    %v1385 = vadd.f32 %v1371, %v1384
    %v1386 = vpop.f32.mrf.mxu0
    %v1387 = vadd.f32 %v1373, %v1386
    %1388 = vdwg.mxu0
    %vm1389 = vcmp.ge.f32.partialorder %v1357, 0.0
    %vm1390 = vcmp.ge.f32.partialorder %v1385, 0.0
    %vm1391 = vcmp.ge.f32.partialorder %v1359, 0.0
    %vm1392 = vcmp.ge.f32.partialorder %v1387, 0.0
    %v1393 = vmul.f32 %v1357, 0.1
    %v1394 = vmul.f32 %v1385, 0.1
    %v1395 = vmul.f32 %v1359, 0.1
    %v1396 = vmul.f32 %v1387, 0.1
    %v1397 = vsel %vm1389, %v1357, %v1393
    %v1398 = vsel %vm1390, %v1385, %v1394
    %v1399 = vsel %vm1391, %v1359, %v1395
    %v1400 = vsel %vm1392, %v1387, %v1396
    %v1401 = vpack.c.bf16 %v1399, %v1397
    %v1402 = vpack.c.bf16 %v1400, %v1398
    %v1403 = vld [vmem:[#allocation6] sm:$0xf]
    %v1404 = vld [vmem:[#allocation6 + $0x4] sm:$0xf]
    %v1405 = vld [vmem:[#allocation6 + $0x8] sm:$0xf]
    %v1406 = vld [vmem:[#allocation6 + $0xc] sm:$0xf]
    %v1407 = vld [vmem:[#allocation6 + $0x10] sm:$0xf]
    %v1408 = vld [vmem:[#allocation6 + $0x14] sm:$0xf]
    %v1409 = vld [vmem:[#allocation6 + $0x18] sm:$0xf]
    %v1410 = vld [vmem:[#allocation6 + $0x1c] sm:$0xf]
    %v1411 = vld [vmem:[#allocation6 + $0x20] sm:$0xf]
    %v1412 = vld [vmem:[#allocation6 + $0x24] sm:$0xf]
    %v1413 = vld [vmem:[#allocation6 + $0x28] sm:$0xf]
    %v1414 = vld [vmem:[#allocation6 + $0x2c] sm:$0xf]
    %v1415 = vld [vmem:[#allocation6 + $0x30] sm:$0xf]
    %v1416 = vld [vmem:[#allocation6 + $0x34] sm:$0xf]
    %v1417 = vld [vmem:[#allocation6 + $0x38] sm:$0xf]
    %v1418 = vld [vmem:[#allocation6 + $0x3c] sm:$0xf]
    %v1419 = vld [vmem:[#allocation6 + $0x40] sm:$0xf]
    %v1420 = vld [vmem:[#allocation6 + $0x44] sm:$0xf]
    %v1421 = vld [vmem:[#allocation6 + $0x48] sm:$0xf]
    %v1422 = vld [vmem:[#allocation6 + $0x4c] sm:$0xf]
    %v1423 = vld [vmem:[#allocation6 + $0x50] sm:$0xf]
    %v1424 = vld [vmem:[#allocation6 + $0x54] sm:$0xf]
    %v1425 = vld [vmem:[#allocation6 + $0x58] sm:$0xf]
    %v1426 = vld [vmem:[#allocation6 + $0x5c] sm:$0xf]
    %v1427 = vld [vmem:[#allocation6 + $0x60] sm:$0xf]
    %v1428 = vld [vmem:[#allocation6 + $0x64] sm:$0xf]
    %v1429 = vld [vmem:[#allocation6 + $0x68] sm:$0xf]
    %v1430 = vld [vmem:[#allocation6 + $0x6c] sm:$0xf]
    %v1431 = vld [vmem:[#allocation6 + $0x70] sm:$0xf]
    %v1432 = vld [vmem:[#allocation6 + $0x74] sm:$0xf]
    %v1433 = vld [vmem:[#allocation6 + $0x78] sm:$0xf]
    %v1434 = vld [vmem:[#allocation6 + $0x7c] sm:$0xf]
    %v1435 = vld [vmem:[%s9] sm:$0x1]
    %v1437 = vperm.slane %v1435, 0
    %v1471 = vunpack.c.l.b16 %v1403
    %v1472 = vunpack.c.l.b16 %v1404
    %v1473 = vunpack.c.l.b16 %v1405
    %v1474 = vunpack.c.l.b16 %v1406
    %v1475 = vunpack.c.l.b16 %v1407
    %v1476 = vunpack.c.l.b16 %v1408
    %v1477 = vunpack.c.l.b16 %v1409
    %v1478 = vunpack.c.l.b16 %v1410
    %v1479 = vunpack.c.l.b16 %v1411
    %v1480 = vunpack.c.l.b16 %v1412
    %v1481 = vunpack.c.l.b16 %v1413
    %v1482 = vunpack.c.l.b16 %v1414
    %v1483 = vunpack.c.l.b16 %v1415
    %v1484 = vunpack.c.l.b16 %v1416
    %v1485 = vunpack.c.l.b16 %v1417
    %v1486 = vunpack.c.l.b16 %v1418
    %v1487 = vunpack.c.l.b16 %v1419
    %v1488 = vunpack.c.l.b16 %v1420
    %v1489 = vunpack.c.l.b16 %v1421
    %v1490 = vunpack.c.l.b16 %v1422
    %v1491 = vunpack.c.l.b16 %v1423
    %v1492 = vunpack.c.l.b16 %v1424
    %v1493 = vunpack.c.l.b16 %v1425
    %v1494 = vunpack.c.l.b16 %v1426
    %v1495 = vunpack.c.l.b16 %v1427
    %v1496 = vunpack.c.l.b16 %v1428
    %v1497 = vunpack.c.l.b16 %v1429
    %v1498 = vunpack.c.l.b16 %v1430
    %v1499 = vunpack.c.l.b16 %v1431
    %v1500 = vunpack.c.l.b16 %v1432
    %v1501 = vunpack.c.l.b16 %v1433
    %v1502 = vunpack.c.l.b16 %v1434
    %v1503 = vpack.c.b16 %v1472, %v1471
    %v1504 = vpack.c.b16 %v1474, %v1473
    %v1505 = vpack.c.b16 %v1476, %v1475
    %v1506 = vpack.c.b16 %v1478, %v1477
    %v1507 = vpack.c.b16 %v1480, %v1479
    %v1508 = vpack.c.b16 %v1482, %v1481
    %v1509 = vpack.c.b16 %v1484, %v1483
    %v1510 = vpack.c.b16 %v1486, %v1485
    %v1511 = vpack.c.b16 %v1488, %v1487
    %v1512 = vpack.c.b16 %v1490, %v1489
    %v1513 = vpack.c.b16 %v1492, %v1491
    %v1514 = vpack.c.b16 %v1494, %v1493
    %v1515 = vpack.c.b16 %v1496, %v1495
    %v1516 = vpack.c.b16 %v1498, %v1497
    %v1517 = vpack.c.b16 %v1500, %v1499
    %v1518 = vpack.c.b16 %v1502, %v1501
    %1535 = vmatpush.bf16.msra.mxu0 %v1510
    %1536 = vmatpush.bf16.msra.mxu0 %v1509
    %1537 = vmatpush.bf16.msra.mxu0 %v1508
    %1538 = vmatpush.bf16.msra.mxu0 %v1507
    %1539 = vmatpush.bf16.msra.mxu0 %v1506
    %1540 = vmatpush.bf16.msra.mxu0 %v1505
    %1541 = vmatpush.bf16.msra.mxu0 %v1504
    %1542 = vmatpush.bf16.msra.mxu0 %v1503
    %1543 = vmatmul.bf16.gmra.mxu0 %v1401
    %v1544 = vpop.f32.mrf.mxu0
    %v1545 = vadd.f32 %v1437, %v1544
    %v1546 = vpop.f32.mrf.mxu0
    %v1547 = vadd.f32 %v1437, %v1546
    %1548 = vdwg.mxu0
    %1549 = vmatpush.bf16.msra.mxu0 %v1518
    %1550 = vmatpush.bf16.msra.mxu0 %v1517
    %1551 = vmatpush.bf16.msra.mxu0 %v1516
    %1552 = vmatpush.bf16.msra.mxu0 %v1515
    %1553 = vmatpush.bf16.msra.mxu0 %v1514
    %1554 = vmatpush.bf16.msra.mxu0 %v1513
    %1555 = vmatpush.bf16.msra.mxu0 %v1512
    %1556 = vmatpush.bf16.msra.mxu0 %v1511
    %1557 = vmatmul.bf16.gmra.mxu0 %v1402
    %v1558 = vpop.f32.mrf.mxu0
    %v1559 = vadd.f32 %v1545, %v1558
    %v1560 = vpop.f32.mrf.mxu0
    %v1561 = vadd.f32 %v1547, %v1560
    %1562 = vdwg.mxu0
    %1563 = vst [vmem:[%s10] sm:$0xff] %v1559
    %1564 = vst [vmem:[%s10 + $0x8] sm:$0xff] %v1561
    // Predicated region
    $region54: #{_forward_encode_impl.1} parent=1 // pred_check
      _
    $region55: #{_forward_encode_impl.1} parent=1 // pred_check_branch
      %1566 = sbr.rel (0) target = $region57
    $region56: #{_forward_encode_impl.1} parent=1 // pred_region
      _
    $region57: #{_forward_encode_impl.1} parent=1 // pred_fallthru
      _
    // Predicated region
    $region58: #{_forward_encode_impl.1} parent=1 // pred_check
      _
    $region59: #{_forward_encode_impl.1} parent=1 // pred_check_branch
      %1568 = sbr.rel (0) target = $region61
    $region60: #{_forward_encode_impl.1} parent=1 // pred_region
      _
    $region61: #{_forward_encode_impl.1} parent=1 // pred_fallthru
      _
    %1569 = vsyncpa [#allocation3], 1
    %1570 = vsyncpa [#allocation5], 1

</llo_original>
